<compile_context>
chip_gen: v5e
topology: v5e:2x2
jax: 0.10.0
libtpu: 0.0.40
codegen_flags: <defaults>
</compile_context>

<pallas_src>
import functools

import jax
import jax.numpy as jnp
import numpy as np
from jax.experimental import pallas as pl
from jax.experimental.pallas import tpu as pltpu


def _mhsa_kernel(x_ref, w1_ref, b1_ref, w2_ref, b2_ref, kge_ref,
                 wout_ref, bout_ref, o_ref, span_sc, runv_sc, *runr_sc,
                 k, n_heads, n_valid, block_n, mask_tail, compute_dtype):
    """One (batch-tile, kge-tile) grid step.

    Grid = (batch tiles ["parallel"], kge tiles ["arbitrary"]).  The span MLP
    runs once per batch tile (first kge tile); a streaming top-k over the kge
    tiles keeps the k best scores and their already-gathered kge rows in VMEM
    scratch; the softmax(exp(topk)) aggregation, the final linear and the one
    lane-dense [Bt, 128] output store happen on the last kge tile.
    """
    H = n_heads
    f32 = jnp.float32
    neg_inf = f32(-jnp.inf)

    n_idx = pl.program_id(1)
    n_last = pl.num_programs(1) - 1

    Bt, Dm = x_ref.shape
    Nt, Dk = kge_ref.shape

    # ---- first kge tile: span-encoding MLP (once per batch tile) + state init
    @pl.when(n_idx == 0)
    def _init():
        x = x_ref[...].astype(compute_dtype)
        # one matmul, heads concatenated on the output dim (lane dim = H*Dm)
        hid = jnp.maximum(
            jnp.dot(x, w1_ref[...].astype(compute_dtype),
                    preferred_element_type=f32) + b1_ref[...], 0.0)
        for h in range(H):
            hid_h = hid[:, h * Dm:(h + 1) * Dm].astype(compute_dtype)
            span_sc[h] = (jnp.dot(hid_h, w2_ref[h].astype(compute_dtype),
                                  preferred_element_type=f32) + b2_ref[h])
        runv_sc[...] = jnp.full(runv_sc.shape, neg_inf, f32)
        for r in runr_sc:            # zero payloads: 0 * 0, not 0 * garbage
            r[...] = jnp.zeros_like(r)

    # ---- every kge tile: scores + local top-k (with row gather) + merge -----
    kge = kge_ref[...]                                     # [Nt, Dk] f32
    span = span_sc[...]                                    # [H, Bt, Dk] f32
    s = jnp.einsum('hbd,nd->hbn',
                   span.astype(compute_dtype), kge.astype(compute_dtype),
                   preferred_element_type=f32)             # [H, Bt, Nt] f32
    if mask_tail:                                          # padded kge rows
        col = (jax.lax.broadcasted_iota(jnp.int32, (1, 1, Nt), 2)
               + n_idx * block_n)
        s = jnp.where(col < n_valid, s, neg_inf)

    # local top-k of this tile: one max reduction per pick; the boolean mask
    # is reused for both the row extraction and the column masking.
    # (Assumes no exact-duplicate scores, as with continuous random data.)
    loc_v, loc_r = [], []
    masked = s
    for _ in range(k):
        m = jnp.max(masked, axis=-1, keepdims=True)        # [H, Bt, 1]
        is_max = masked == m                               # [H, Bt, Nt]
        # gather the selected kge row per (h, b): one-hot contraction over
        # this tile only.
        # TODO(synk): at production N replace with an index gather
        # (indices -> SMEM -> per-row DMA) so it costs O(k) HBM reads.
        row = jnp.einsum('hbn,nd->hbd', is_max.astype(f32), kge,
                         preferred_element_type=f32)       # [H, Bt, Dk]
        loc_v.append(m)
        loc_r.append(row)
        masked = jnp.where(is_max, neg_inf, masked)

    # merge local candidates with the running top-k (VPU only, no reductions).
    run_v = runv_sc[...]                                   # [H, Bt, k]
    cand_v = [run_v[:, :, j:j + 1] for j in range(k)] + loc_v
    cand_r = [runr_sc[j][...] for j in range(k)] + loc_r
    new_v, new_r = [], []
    for _ in range(k):
        m = cand_v[0]
        for t in range(1, 2 * k):
            m = jnp.maximum(m, cand_v[t])                  # [H, Bt, 1]
        row = jnp.zeros((H, Bt, Dk), f32)
        nxt = []
        for t in range(2 * k):
            sel = cand_v[t] == m
            row = row + jnp.where(sel, cand_r[t], 0.0)     # payload select
            nxt.append(jnp.where(sel, neg_inf, cand_v[t]))
        cand_v = nxt
        new_v.append(m)
        new_r.append(row)
    runv_sc[...] = jnp.concatenate(new_v, axis=-1)         # [H, Bt, k]
    for j in range(k):
        runr_sc[j][...] = new_r[j]

    # ---- last kge tile: softmax(exp(topk)), k weighted row adds, final linear
    @pl.when(n_idx == n_last)
    def _finalize():
        v = runv_sc[...]                                   # [H, Bt, k]
        # double exponential per the module spec (overflows for scores > ~88,
        # exactly like the PyTorch reference).
        e = jnp.exp(v)
        e_max = jnp.max(e, axis=-1, keepdims=True)
        w = jnp.exp(e - e_max)
        w = w / jnp.sum(w, axis=-1, keepdims=True)
        hval = jnp.zeros((H, Bt, Dk), f32)
        for j in range(k):                                 # O(k) aggregation
            hval = hval + w[:, :, j:j + 1] * runr_sc[j][...]
        # final linear: heads concatenated on lanes -> one K = H*Dk matmul,
        # single unmasked lane-dense [Bt, 128] store.
        hval_cat = jnp.concatenate([hval[h] for h in range(H)], axis=-1)
        acc = jnp.dot(hval_cat.astype(compute_dtype),
                      wout_ref[...].astype(compute_dtype),
                      preferred_element_type=f32)
        o_ref[...] = acc + bout_ref[...]


def prepare_params(W1, b1, W2, b2, Wout_h, bout, kge_emb, *, block_n=128):
    """One-time layout prep of the constant parameters (hoisted out of the
    per-call path): head-concat of the first MLP layer, 128-lane padding of
    the final linear, kge row padding to a multiple of the N tile."""
    H, Dm, _ = W1.shape
    Dk = W2.shape[-1]
    LANE = 128
    Dk_pad = ((Dk + LANE - 1) // LANE) * LANE

    w1cat = jnp.concatenate([W1[h] for h in range(H)], axis=1)          # [Dm, H*Dm]
    b1cat = jnp.concatenate([b1[h] for h in range(H)], axis=1)          # [1, H*Dm]

    wout_cat = jnp.concatenate([Wout_h[h] for h in range(H)], axis=0)   # [H*Dk, Dk]
    wout_p = jnp.zeros((H * Dk, Dk_pad), jnp.float32).at[:, :Dk].set(wout_cat)
    bout_p = jnp.zeros((1, Dk_pad), jnp.float32).at[:, :Dk].set(bout.reshape(1, Dk))

    N = kge_emb.shape[0]
    N_pad = ((N + block_n - 1) // block_n) * block_n
    kge_p = jnp.zeros((N_pad, Dk), jnp.float32).at[:N].set(kge_emb)

    return dict(w1cat=w1cat, b1cat=b1cat, w2=W2, b2=b2, wout=wout_p,
                bout=bout_p, kge=kge_p, n_valid=N, block_n=block_n,
                H=H, Dm=Dm, Dk=Dk, Dk_pad=Dk_pad)


def multi_head_sparse_attention(x, prepped, *, k, block_b=8,
                                compute_dtype=jnp.float32):
    H, Dm, Dk, Dk_pad = (prepped['H'], prepped['Dm'], prepped['Dk'],
                         prepped['Dk_pad'])
    block_n = prepped['block_n']
    n_valid = prepped['n_valid']
    kge_p = prepped['kge']
    N_pad = kge_p.shape[0]

    tail = n_valid % block_n
    assert n_valid >= k and (tail == 0 or tail >= k), \
        "every kge tile must contain at least k valid rows"

    B = x.shape[0]
    B_pad = ((B + block_b - 1) // block_b) * block_b       # sublane-dense batch
    x_p = jnp.zeros((B_pad, Dm), jnp.float32).at[:B].set(x)

    nb = B_pad // block_b
    nn = N_pad // block_n

    kernel = functools.partial(
        _mhsa_kernel, k=k, n_heads=H, n_valid=n_valid, block_n=block_n,
        mask_tail=(N_pad != n_valid), compute_dtype=compute_dtype)

    out_p = pl.pallas_call(
        kernel,
        out_shape=jax.ShapeDtypeStruct((B_pad, Dk_pad), jnp.float32),
        grid_spec=pltpu.PrefetchScalarGridSpec(
            num_scalar_prefetch=0,
            grid=(nb, nn),
            in_specs=[
                pl.BlockSpec((block_b, Dm), lambda b, n: (b, 0)),      # x
                pl.BlockSpec((Dm, H * Dm), lambda b, n: (0, 0)),       # W1 cat
                pl.BlockSpec((1, H * Dm), lambda b, n: (0, 0)),        # b1 cat
                pl.BlockSpec((H, Dm, Dk), lambda b, n: (0, 0, 0)),     # W2
                pl.BlockSpec((H, 1, Dk), lambda b, n: (0, 0, 0)),      # b2
                pl.BlockSpec((block_n, Dk), lambda b, n: (n, 0)),      # kge tile
                pl.BlockSpec((H * Dk, Dk_pad), lambda b, n: (0, 0)),   # Wout
                pl.BlockSpec((1, Dk_pad), lambda b, n: (0, 0)),        # bout
            ],
            out_specs=pl.BlockSpec((block_b, Dk_pad), lambda b, n: (b, 0)),
            scratch_shapes=(
                [pltpu.VMEM((H, block_b, Dk), jnp.float32),    # span encoding
                 pltpu.VMEM((H, block_b, k), jnp.float32)]     # running top-k values
                + [pltpu.VMEM((H, block_b, Dk), jnp.float32)   # running top-k rows
                   for _ in range(k)])),
        compiler_params=pltpu.CompilerParams(
            dimension_semantics=("parallel", "arbitrary")),
    )(x_p, prepped['w1cat'], prepped['b1cat'], prepped['w2'], prepped['b2'],
      kge_p, prepped['wout'], prepped['bout'])

    return out_p[:B, :Dk]


def reference(x, W1, b1, W2, b2, Wout_h, bout, kge_emb, k):
    # pure-JAX mirror of the PyTorch forward
    H = W1.shape[0]
    head_outs = []
    for h in range(H):
        hid = jnp.maximum(x @ W1[h] + b1[h, 0], 0.0)
        spanned = hid @ W2[h] + b2[h, 0]
        dot = spanned @ kge_emb.T
        vals, idx = jax.lax.top_k(dot, k)
        e = jnp.exp(vals)
        w = jax.nn.softmax(e, axis=1)
        topval = kge_emb[idx]                              # [B, k, Dk]
        head_outs.append(jnp.einsum('bk,bkd->bd', w, topval))
    out = sum(head_outs[h] @ Wout_h[h] for h in range(H)) + bout[0, 0]
    return out


if __name__ == "__main__":
    # small, forward-consistent shapes (2 batch tiles x 2 kge tiles)
    B, mlp_dim, kge_dim, N_kge, k, n_heads = 12, 32, 16, 200, 4, 2

    key = jax.random.PRNGKey(0)
    ks = jax.random.split(key, 8)

    x = jax.random.normal(ks[0], (B, mlp_dim), jnp.float32)
    kge_emb = jax.random.normal(ks[1], (N_kge, kge_dim), jnp.float32)

    # deterministic per-head parameters (synthetic, not a checkpoint)
    W1 = 0.2 * jax.random.normal(ks[2], (n_heads, mlp_dim, mlp_dim), jnp.float32)
    b1 = 0.1 * jax.random.normal(ks[3], (n_heads, 1, mlp_dim), jnp.float32)
    W2 = 0.2 * jax.random.normal(ks[4], (n_heads, mlp_dim, kge_dim), jnp.float32)
    b2 = 0.1 * jax.random.normal(ks[5], (n_heads, 1, kge_dim), jnp.float32)
    # final nn.Linear(n_heads*kge_dim, kge_dim): W.T split into per-head blocks
    Wout_h = 0.2 * jax.random.normal(ks[6], (n_heads, kge_dim, kge_dim), jnp.float32)
    bout = 0.1 * jax.random.normal(ks[7], (1, 1, kge_dim), jnp.float32)

    # one-time constant-parameter layout prep (hoisted out of the call path)
    prepped = prepare_params(W1, b1, W2, b2, Wout_h, bout, kge_emb, block_n=128)

    out = multi_head_sparse_attention(x, prepped, k=k)
    out = jax.block_until_ready(out)

    ref = reference(x, W1, b1, W2, b2, Wout_h, bout, kge_emb, k)
    np.testing.assert_allclose(np.asarray(out), np.asarray(ref),
                               rtol=1e-4, atol=1e-4)
    print("KERNEL_OK")
</pallas_src>

<mosaic_0001>
module attributes {stable_mosaic.version = 11 : i64} {
  func.func @_mhsa_kernel(%arg0: i32, %arg1: i32, %arg2: memref<8x32xf32, #tpu.memory_space<vmem>>, %arg3: memref<32x64xf32, #tpu.memory_space<vmem>>, %arg4: memref<1x64xf32, #tpu.memory_space<vmem>>, %arg5: memref<2x32x16xf32, #tpu.memory_space<vmem>>, %arg6: memref<2x1x16xf32, #tpu.memory_space<vmem>>, %arg7: memref<128x16xf32, #tpu.memory_space<vmem>>, %arg8: memref<32x128xf32, #tpu.memory_space<vmem>>, %arg9: memref<1x128xf32, #tpu.memory_space<vmem>>, %arg10: memref<8x128xf32, #tpu.memory_space<vmem>>, %arg11: memref<2x8x16xf32, #tpu.memory_space<vmem>>, %arg12: memref<2x8x4xf32, #tpu.memory_space<vmem>>, %arg13: memref<2x8x16xf32, #tpu.memory_space<vmem>>, %arg14: memref<2x8x16xf32, #tpu.memory_space<vmem>>, %arg15: memref<2x8x16xf32, #tpu.memory_space<vmem>>, %arg16: memref<2x8x16xf32, #tpu.memory_space<vmem>>) attributes {dimension_semantics = [#tpu.dimension_semantics<parallel>, #tpu.dimension_semantics<arbitrary>], iteration_bounds = array<i64: 2, 2>, scalar_prefetch = 0 : i64, scratch_operands = 6 : i64, tpu.core_type = #tpu.core_type<tc>, window_params = [{transform_indices = @transform_0, window_bounds = array<i64: 8, 32>}, {pipeline_mode = #tpu.pipeline_mode<synchronous>, transform_indices = @transform_1, window_bounds = array<i64: 32, 64>}, {pipeline_mode = #tpu.pipeline_mode<synchronous>, transform_indices = @transform_2, window_bounds = array<i64: 1, 64>}, {pipeline_mode = #tpu.pipeline_mode<synchronous>, transform_indices = @transform_3, window_bounds = array<i64: 2, 32, 16>}, {pipeline_mode = #tpu.pipeline_mode<synchronous>, transform_indices = @transform_4, window_bounds = array<i64: 2, 1, 16>}, {transform_indices = @transform_5, window_bounds = array<i64: 128, 16>}, {pipeline_mode = #tpu.pipeline_mode<synchronous>, transform_indices = @transform_6, window_bounds = array<i64: 32, 128>}, {pipeline_mode = #tpu.pipeline_mode<synchronous>, transform_indices = @transform_7, window_bounds = array<i64: 1, 128>}, {transform_indices = @transform_8, window_bounds = array<i64: 8, 128>}]} {
    %c0_i32 = arith.constant 0 : i32
    %0 = arith.cmpi eq, %arg1, %c0_i32 : i32
    %1 = arith.extui %0 : i1 to i32
    %cst = arith.constant 0xFF800000 : f32
    %c0_i32_0 = arith.constant 0 : i32
    %2 = arith.cmpi ne, %1, %c0_i32_0 : i32
    scf.if %2 {
      %c0_109 = arith.constant 0 : index
      %c0_110 = arith.constant 0 : index
      %340 = vector.load %arg2[%c0_109, %c0_110] : memref<8x32xf32, #tpu.memory_space<vmem>>, vector<8x32xf32>
      %c0_111 = arith.constant 0 : index
      %c0_112 = arith.constant 0 : index
      %341 = vector.load %arg3[%c0_111, %c0_112] : memref<32x64xf32, #tpu.memory_space<vmem>>, vector<32x64xf32>
      %cst_113 = arith.constant dense<0.000000e+00> : vector<8x64xf32>
      %342 = tpu.matmul %340, %341, %cst_113 {dimension_numbers = #tpu.dot_dimension_numbers<[1], [0], [0], [1], [0, 0, 1, 1], [], []>} : vector<8x32xf32>, vector<32x64xf32>, vector<8x64xf32> -> vector<8x64xf32>
      %c0_114 = arith.constant 0 : index
      %c0_115 = arith.constant 0 : index
      %343 = vector.load %arg4[%c0_114, %c0_115] : memref<1x64xf32, #tpu.memory_space<vmem>>, vector<1x64xf32>
      %344 = vector.broadcast %343 : vector<1x64xf32> to vector<8x64xf32>
      %345 = arith.addf %342, %344 : vector<8x64xf32>
      %cst_116 = arith.constant 0.000000e+00 : f32
      %346 = vector.broadcast %cst_116 : f32 to vector<8x64xf32>
      %347 = arith.maximumf %345, %346 : vector<8x64xf32>
      %348 = vector.extract_strided_slice %347 {offsets = [0, 0], sizes = [8, 32], strides = [1, 1]} : vector<8x64xf32> to vector<8x32xf32>
      %c0_117 = arith.constant 0 : index
      %c0_118 = arith.constant 0 : index
      %c0_119 = arith.constant 0 : index
      %349 = vector.load %arg5[%c0_117, %c0_118, %c0_119] : memref<2x32x16xf32, #tpu.memory_space<vmem>>, vector<1x32x16xf32>
      %350 = vector.shape_cast %349 : vector<1x32x16xf32> to vector<32x16xf32>
      %cst_120 = arith.constant dense<0.000000e+00> : vector<8x16xf32>
      %351 = tpu.matmul %348, %350, %cst_120 {dimension_numbers = #tpu.dot_dimension_numbers<[1], [0], [0], [1], [0, 0, 1, 1], [], []>} : vector<8x32xf32>, vector<32x16xf32>, vector<8x16xf32> -> vector<8x16xf32>
      %c0_121 = arith.constant 0 : index
      %c0_122 = arith.constant 0 : index
      %c0_123 = arith.constant 0 : index
      %352 = vector.load %arg6[%c0_121, %c0_122, %c0_123] : memref<2x1x16xf32, #tpu.memory_space<vmem>>, vector<1x1x16xf32>
      %353 = vector.shape_cast %352 : vector<1x1x16xf32> to vector<1x16xf32>
      %354 = vector.broadcast %353 : vector<1x16xf32> to vector<8x16xf32>
      %355 = arith.addf %351, %354 : vector<8x16xf32>
      %c0_124 = arith.constant 0 : index
      %c0_125 = arith.constant 0 : index
      %c0_126 = arith.constant 0 : index
      %356 = vector.load %arg11[%c0_124, %c0_125, %c0_126] : memref<2x8x16xf32, #tpu.memory_space<vmem>>, vector<1x8x16xf32>
      %357 = vector.shape_cast %356 : vector<1x8x16xf32> to vector<8x16xf32>
      %358 = vector.shape_cast %355 : vector<8x16xf32> to vector<1x8x16xf32>
      tpu.vector_store %arg11[%c0_124, %c0_125, %c0_126], %358 {strides = array<i32>} : memref<2x8x16xf32, #tpu.memory_space<vmem>>, vector<1x8x16xf32>,
      %359 = vector.extract_strided_slice %347 {offsets = [0, 32], sizes = [8, 32], strides = [1, 1]} : vector<8x64xf32> to vector<8x32xf32>
      %c1 = arith.constant 1 : index
      %c0_127 = arith.constant 0 : index
      %c0_128 = arith.constant 0 : index
      %360 = vector.load %arg5[%c1, %c0_127, %c0_128] : memref<2x32x16xf32, #tpu.memory_space<vmem>>, vector<1x32x16xf32>
      %361 = vector.shape_cast %360 : vector<1x32x16xf32> to vector<32x16xf32>
      %cst_129 = arith.constant dense<0.000000e+00> : vector<8x16xf32>
      %362 = tpu.matmul %359, %361, %cst_129 {dimension_numbers = #tpu.dot_dimension_numbers<[1], [0], [0], [1], [0, 0, 1, 1], [], []>} : vector<8x32xf32>, vector<32x16xf32>, vector<8x16xf32> -> vector<8x16xf32>
      %c1_130 = arith.constant 1 : index
      %c0_131 = arith.constant 0 : index
      %c0_132 = arith.constant 0 : index
      %363 = vector.load %arg6[%c1_130, %c0_131, %c0_132] : memref<2x1x16xf32, #tpu.memory_space<vmem>>, vector<1x1x16xf32>
      %364 = vector.shape_cast %363 : vector<1x1x16xf32> to vector<1x16xf32>
      %365 = vector.broadcast %364 : vector<1x16xf32> to vector<8x16xf32>
      %366 = arith.addf %362, %365 : vector<8x16xf32>
      %c1_133 = arith.constant 1 : index
      %c0_134 = arith.constant 0 : index
      %c0_135 = arith.constant 0 : index
      %367 = vector.load %arg11[%c1_133, %c0_134, %c0_135] : memref<2x8x16xf32, #tpu.memory_space<vmem>>, vector<1x8x16xf32>
      %368 = vector.shape_cast %367 : vector<1x8x16xf32> to vector<8x16xf32>
      %369 = vector.shape_cast %366 : vector<8x16xf32> to vector<1x8x16xf32>
      tpu.vector_store %arg11[%c1_133, %c0_134, %c0_135], %369 {strides = array<i32>} : memref<2x8x16xf32, #tpu.memory_space<vmem>>, vector<1x8x16xf32>,
      %370 = vector.broadcast %cst : f32 to vector<2x8x4xf32>
      %c0_136 = arith.constant 0 : index
      %c0_137 = arith.constant 0 : index
      %c0_138 = arith.constant 0 : index
      %371 = vector.load %arg12[%c0_136, %c0_137, %c0_138] : memref<2x8x4xf32, #tpu.memory_space<vmem>>, vector<2x8x4xf32>
      tpu.vector_store %arg12[%c0_136, %c0_137, %c0_138], %370 {strides = array<i32>} : memref<2x8x4xf32, #tpu.memory_space<vmem>>, vector<2x8x4xf32>,
      %cst_139 = arith.constant 0.000000e+00 : f32
      %372 = vector.broadcast %cst_139 : f32 to vector<2x8x16xf32>
      %c0_140 = arith.constant 0 : index
      %c0_141 = arith.constant 0 : index
      %c0_142 = arith.constant 0 : index
      %373 = vector.load %arg13[%c0_140, %c0_141, %c0_142] : memref<2x8x16xf32, #tpu.memory_space<vmem>>, vector<2x8x16xf32>
      tpu.vector_store %arg13[%c0_140, %c0_141, %c0_142], %372 {strides = array<i32>} : memref<2x8x16xf32, #tpu.memory_space<vmem>>, vector<2x8x16xf32>,
      %cst_143 = arith.constant 0.000000e+00 : f32
      %374 = vector.broadcast %cst_143 : f32 to vector<2x8x16xf32>
      %c0_144 = arith.constant 0 : index
      %c0_145 = arith.constant 0 : index
      %c0_146 = arith.constant 0 : index
      %375 = vector.load %arg14[%c0_144, %c0_145, %c0_146] : memref<2x8x16xf32, #tpu.memory_space<vmem>>, vector<2x8x16xf32>
      tpu.vector_store %arg14[%c0_144, %c0_145, %c0_146], %374 {strides = array<i32>} : memref<2x8x16xf32, #tpu.memory_space<vmem>>, vector<2x8x16xf32>,
      %cst_147 = arith.constant 0.000000e+00 : f32
      %376 = vector.broadcast %cst_147 : f32 to vector<2x8x16xf32>
      %c0_148 = arith.constant 0 : index
      %c0_149 = arith.constant 0 : index
      %c0_150 = arith.constant 0 : index
      %377 = vector.load %arg15[%c0_148, %c0_149, %c0_150] : memref<2x8x16xf32, #tpu.memory_space<vmem>>, vector<2x8x16xf32>
      tpu.vector_store %arg15[%c0_148, %c0_149, %c0_150], %376 {strides = array<i32>} : memref<2x8x16xf32, #tpu.memory_space<vmem>>, vector<2x8x16xf32>,
      %cst_151 = arith.constant 0.000000e+00 : f32
      %378 = vector.broadcast %cst_151 : f32 to vector<2x8x16xf32>
      %c0_152 = arith.constant 0 : index
      %c0_153 = arith.constant 0 : index
      %c0_154 = arith.constant 0 : index
      %379 = vector.load %arg16[%c0_152, %c0_153, %c0_154] : memref<2x8x16xf32, #tpu.memory_space<vmem>>, vector<2x8x16xf32>
      tpu.vector_store %arg16[%c0_152, %c0_153, %c0_154], %378 {strides = array<i32>} : memref<2x8x16xf32, #tpu.memory_space<vmem>>, vector<2x8x16xf32>,
    } else {
    }
    %c0 = arith.constant 0 : index
    %c0_1 = arith.constant 0 : index
    %3 = vector.load %arg7[%c0, %c0_1] : memref<128x16xf32, #tpu.memory_space<vmem>>, vector<128x16xf32>
    %c0_2 = arith.constant 0 : index
    %c0_3 = arith.constant 0 : index
    %c0_4 = arith.constant 0 : index
    %4 = vector.load %arg11[%c0_2, %c0_3, %c0_4] : memref<2x8x16xf32, #tpu.memory_space<vmem>>, vector<2x8x16xf32>
    "tpu.trace_start"() <{level = 10 : i32, message = "hbd,nd->hbn"}> : () -> ()
    %cst_5 = arith.constant dense<0.000000e+00> : vector<2x8x128xf32>
    %5 = tpu.matmul %4, %3, %cst_5 {dimension_numbers = #tpu.dot_dimension_numbers<[2], [1], [0, 1], [0], [0, 0, 0, 1, 1, 0], [], []>} : vector<2x8x16xf32>, vector<128x16xf32>, vector<2x8x128xf32> -> vector<2x8x128xf32>
    "tpu.trace_stop"() : () -> ()
    %6 = tpu.iota {dimensions = array<i32: 2>} : vector<1x1x128xi32>
    %c128_i32 = arith.constant 128 : i32
    %7 = arith.muli %arg1, %c128_i32 : i32
    %8 = vector.broadcast %7 : i32 to vector<1x1x128xi32>
    %9 = arith.addi %6, %8 : vector<1x1x128xi32>
    %c200_i32 = arith.constant 200 : i32
    %10 = vector.broadcast %c200_i32 : i32 to vector<1x1x128xi32>
    %11 = arith.cmpi slt, %9, %10 : vector<1x1x128xi32>
    %cst_6 = arith.constant 0xFF800000 : f32
    %12 = vector.shape_cast %11 : vector<1x1x128xi1> to vector<1x1x128xi1>
    %13 = vector.broadcast %12 : vector<1x1x128xi1> to vector<2x8x128xi1>
    %14 = vector.broadcast %cst_6 : f32 to vector<2x8x128xf32>
    %15 = arith.select %13, %5, %14 : vector<2x8x128xi1>, vector<2x8x128xf32>
    %cst_7 = arith.constant dense<0xFF800000> : vector<2x8xf32>
    %16 = vector.multi_reduction <maximumf>, %15, %cst_7 [2] : vector<2x8x128xf32> to vector<2x8xf32>
    %17 = vector.shape_cast %16 : vector<2x8xf32> to vector<2x8x1xf32>
    %18 = vector.broadcast %17 : vector<2x8x1xf32> to vector<2x8x128xf32>
    %19 = arith.cmpf oeq, %15, %18 : vector<2x8x128xf32>
    %20 = arith.extui %19 : vector<2x8x128xi1> to vector<2x8x128xi32>
    %21 = arith.sitofp %20 : vector<2x8x128xi32> to vector<2x8x128xf32>
    "tpu.trace_start"() <{level = 10 : i32, message = "hbn,nd->hbd"}> : () -> ()
    %cst_8 = arith.constant dense<0.000000e+00> : vector<2x8x16xf32>
    %22 = tpu.matmul %21, %3, %cst_8 {dimension_numbers = #tpu.dot_dimension_numbers<[2], [0], [0, 1], [1], [0, 0, 0, 1, 1, 1], [], []>} : vector<2x8x128xf32>, vector<128x16xf32>, vector<2x8x16xf32> -> vector<2x8x16xf32>
    %cst_9 = arith.constant 0xFF800000 : f32
    "tpu.trace_stop"() : () -> ()
    %23 = vector.broadcast %cst_9 : f32 to vector<2x8x128xf32>
    %24 = arith.select %19, %23, %15 : vector<2x8x128xi1>, vector<2x8x128xf32>
    %cst_10 = arith.constant dense<0xFF800000> : vector<2x8xf32>
    %25 = vector.multi_reduction <maximumf>, %24, %cst_10 [2] : vector<2x8x128xf32> to vector<2x8xf32>
    %26 = vector.shape_cast %25 : vector<2x8xf32> to vector<2x8x1xf32>
    %27 = vector.broadcast %26 : vector<2x8x1xf32> to vector<2x8x128xf32>
    %28 = arith.cmpf oeq, %24, %27 : vector<2x8x128xf32>
    %29 = arith.extui %28 : vector<2x8x128xi1> to vector<2x8x128xi32>
    %30 = arith.sitofp %29 : vector<2x8x128xi32> to vector<2x8x128xf32>
    "tpu.trace_start"() <{level = 10 : i32, message = "hbn,nd->hbd"}> : () -> ()
    %cst_11 = arith.constant dense<0.000000e+00> : vector<2x8x16xf32>
    %31 = tpu.matmul %30, %3, %cst_11 {dimension_numbers = #tpu.dot_dimension_numbers<[2], [0], [0, 1], [1], [0, 0, 0, 1, 1, 1], [], []>} : vector<2x8x128xf32>, vector<128x16xf32>, vector<2x8x16xf32> -> vector<2x8x16xf32>
    %cst_12 = arith.constant 0xFF800000 : f32
    "tpu.trace_stop"() : () -> ()
    %32 = vector.broadcast %cst_12 : f32 to vector<2x8x128xf32>
    %33 = arith.select %28, %32, %24 : vector<2x8x128xi1>, vector<2x8x128xf32>
    %cst_13 = arith.constant dense<0xFF800000> : vector<2x8xf32>
    %34 = vector.multi_reduction <maximumf>, %33, %cst_13 [2] : vector<2x8x128xf32> to vector<2x8xf32>
    %35 = vector.shape_cast %34 : vector<2x8xf32> to vector<2x8x1xf32>
    %36 = vector.broadcast %35 : vector<2x8x1xf32> to vector<2x8x128xf32>
    %37 = arith.cmpf oeq, %33, %36 : vector<2x8x128xf32>
    %38 = arith.extui %37 : vector<2x8x128xi1> to vector<2x8x128xi32>
    %39 = arith.sitofp %38 : vector<2x8x128xi32> to vector<2x8x128xf32>
    "tpu.trace_start"() <{level = 10 : i32, message = "hbn,nd->hbd"}> : () -> ()
    %cst_14 = arith.constant dense<0.000000e+00> : vector<2x8x16xf32>
    %40 = tpu.matmul %39, %3, %cst_14 {dimension_numbers = #tpu.dot_dimension_numbers<[2], [0], [0, 1], [1], [0, 0, 0, 1, 1, 1], [], []>} : vector<2x8x128xf32>, vector<128x16xf32>, vector<2x8x16xf32> -> vector<2x8x16xf32>
    %cst_15 = arith.constant 0xFF800000 : f32
    "tpu.trace_stop"() : () -> ()
    %41 = vector.broadcast %cst_15 : f32 to vector<2x8x128xf32>
    %42 = arith.select %37, %41, %33 : vector<2x8x128xi1>, vector<2x8x128xf32>
    %cst_16 = arith.constant dense<0xFF800000> : vector<2x8xf32>
    %43 = vector.multi_reduction <maximumf>, %42, %cst_16 [2] : vector<2x8x128xf32> to vector<2x8xf32>
    %44 = vector.shape_cast %43 : vector<2x8xf32> to vector<2x8x1xf32>
    %45 = vector.broadcast %44 : vector<2x8x1xf32> to vector<2x8x128xf32>
    %46 = arith.cmpf oeq, %42, %45 : vector<2x8x128xf32>
    %47 = arith.extui %46 : vector<2x8x128xi1> to vector<2x8x128xi32>
    %48 = arith.sitofp %47 : vector<2x8x128xi32> to vector<2x8x128xf32>
    "tpu.trace_start"() <{level = 10 : i32, message = "hbn,nd->hbd"}> : () -> ()
    %cst_17 = arith.constant dense<0.000000e+00> : vector<2x8x16xf32>
    %49 = tpu.matmul %48, %3, %cst_17 {dimension_numbers = #tpu.dot_dimension_numbers<[2], [0], [0, 1], [1], [0, 0, 0, 1, 1, 1], [], []>} : vector<2x8x128xf32>, vector<128x16xf32>, vector<2x8x16xf32> -> vector<2x8x16xf32>
    "tpu.trace_stop"() : () -> ()
    %c0_18 = arith.constant 0 : index
    %c0_19 = arith.constant 0 : index
    %c0_20 = arith.constant 0 : index
    %50 = vector.load %arg12[%c0_18, %c0_19, %c0_20] : memref<2x8x4xf32, #tpu.memory_space<vmem>>, vector<2x8x4xf32>
    %51 = vector.extract_strided_slice %50 {offsets = [0, 0, 0], sizes = [2, 8, 1], strides = [1, 1, 1]} : vector<2x8x4xf32> to vector<2x8x1xf32>
    %52 = vector.extract_strided_slice %50 {offsets = [0, 0, 1], sizes = [2, 8, 1], strides = [1, 1, 1]} : vector<2x8x4xf32> to vector<2x8x1xf32>
    %53 = vector.extract_strided_slice %50 {offsets = [0, 0, 2], sizes = [2, 8, 1], strides = [1, 1, 1]} : vector<2x8x4xf32> to vector<2x8x1xf32>
    %54 = vector.extract_strided_slice %50 {offsets = [0, 0, 3], sizes = [2, 8, 1], strides = [1, 1, 1]} : vector<2x8x4xf32> to vector<2x8x1xf32>
    %c0_21 = arith.constant 0 : index
    %c0_22 = arith.constant 0 : index
    %c0_23 = arith.constant 0 : index
    %55 = vector.load %arg13[%c0_21, %c0_22, %c0_23] : memref<2x8x16xf32, #tpu.memory_space<vmem>>, vector<2x8x16xf32>
    %c0_24 = arith.constant 0 : index
    %c0_25 = arith.constant 0 : index
    %c0_26 = arith.constant 0 : index
    %56 = vector.load %arg14[%c0_24, %c0_25, %c0_26] : memref<2x8x16xf32, #tpu.memory_space<vmem>>, vector<2x8x16xf32>
    %c0_27 = arith.constant 0 : index
    %c0_28 = arith.constant 0 : index
    %c0_29 = arith.constant 0 : index
    %57 = vector.load %arg15[%c0_27, %c0_28, %c0_29] : memref<2x8x16xf32, #tpu.memory_space<vmem>>, vector<2x8x16xf32>
    %c0_30 = arith.constant 0 : index
    %c0_31 = arith.constant 0 : index
    %c0_32 = arith.constant 0 : index
    %58 = vector.load %arg16[%c0_30, %c0_31, %c0_32] : memref<2x8x16xf32, #tpu.memory_space<vmem>>, vector<2x8x16xf32>
    %59 = arith.maximumf %51, %52 : vector<2x8x1xf32>
    %60 = arith.maximumf %59, %53 : vector<2x8x1xf32>
    %61 = arith.maximumf %60, %54 : vector<2x8x1xf32>
    %62 = arith.maximumf %61, %17 : vector<2x8x1xf32>
    %63 = arith.maximumf %62, %26 : vector<2x8x1xf32>
    %64 = arith.maximumf %63, %35 : vector<2x8x1xf32>
    %65 = arith.maximumf %64, %44 : vector<2x8x1xf32>
    %cst_33 = arith.constant 0.000000e+00 : f32
    %66 = vector.broadcast %cst_33 : f32 to vector<2x8x16xf32>
    %67 = arith.cmpf oeq, %51, %65 : vector<2x8x1xf32>
    %cst_34 = arith.constant 0.000000e+00 : f32
    %68 = vector.shape_cast %67 : vector<2x8x1xi1> to vector<2x8x1xi1>
    %69 = vector.broadcast %68 : vector<2x8x1xi1> to vector<2x8x16xi1>
    %70 = vector.broadcast %cst_34 : f32 to vector<2x8x16xf32>
    %71 = arith.select %69, %55, %70 : vector<2x8x16xi1>, vector<2x8x16xf32>
    %72 = arith.addf %66, %71 : vector<2x8x16xf32>
    %cst_35 = arith.constant 0xFF800000 : f32
    %73 = vector.broadcast %cst_35 : f32 to vector<2x8x1xf32>
    %74 = arith.select %67, %73, %51 : vector<2x8x1xi1>, vector<2x8x1xf32>
    %75 = arith.cmpf oeq, %52, %65 : vector<2x8x1xf32>
    %cst_36 = arith.constant 0.000000e+00 : f32
    %76 = vector.shape_cast %75 : vector<2x8x1xi1> to vector<2x8x1xi1>
    %77 = vector.broadcast %76 : vector<2x8x1xi1> to vector<2x8x16xi1>
    %78 = vector.broadcast %cst_36 : f32 to vector<2x8x16xf32>
    %79 = arith.select %77, %56, %78 : vector<2x8x16xi1>, vector<2x8x16xf32>
    %80 = arith.addf %72, %79 : vector<2x8x16xf32>
    %cst_37 = arith.constant 0xFF800000 : f32
    %81 = vector.broadcast %cst_37 : f32 to vector<2x8x1xf32>
    %82 = arith.select %75, %81, %52 : vector<2x8x1xi1>, vector<2x8x1xf32>
    %83 = arith.cmpf oeq, %53, %65 : vector<2x8x1xf32>
    %cst_38 = arith.constant 0.000000e+00 : f32
    %84 = vector.shape_cast %83 : vector<2x8x1xi1> to vector<2x8x1xi1>
    %85 = vector.broadcast %84 : vector<2x8x1xi1> to vector<2x8x16xi1>
    %86 = vector.broadcast %cst_38 : f32 to vector<2x8x16xf32>
    %87 = arith.select %85, %57, %86 : vector<2x8x16xi1>, vector<2x8x16xf32>
    %88 = arith.addf %80, %87 : vector<2x8x16xf32>
    %cst_39 = arith.constant 0xFF800000 : f32
    %89 = vector.broadcast %cst_39 : f32 to vector<2x8x1xf32>
    %90 = arith.select %83, %89, %53 : vector<2x8x1xi1>, vector<2x8x1xf32>
    %91 = arith.cmpf oeq, %54, %65 : vector<2x8x1xf32>
    %cst_40 = arith.constant 0.000000e+00 : f32
    %92 = vector.shape_cast %91 : vector<2x8x1xi1> to vector<2x8x1xi1>
    %93 = vector.broadcast %92 : vector<2x8x1xi1> to vector<2x8x16xi1>
    %94 = vector.broadcast %cst_40 : f32 to vector<2x8x16xf32>
    %95 = arith.select %93, %58, %94 : vector<2x8x16xi1>, vector<2x8x16xf32>
    %96 = arith.addf %88, %95 : vector<2x8x16xf32>
    %cst_41 = arith.constant 0xFF800000 : f32
    %97 = vector.broadcast %cst_41 : f32 to vector<2x8x1xf32>
    %98 = arith.select %91, %97, %54 : vector<2x8x1xi1>, vector<2x8x1xf32>
    %99 = arith.cmpf oeq, %17, %65 : vector<2x8x1xf32>
    %cst_42 = arith.constant 0.000000e+00 : f32
    %100 = vector.shape_cast %99 : vector<2x8x1xi1> to vector<2x8x1xi1>
    %101 = vector.broadcast %100 : vector<2x8x1xi1> to vector<2x8x16xi1>
    %102 = vector.broadcast %cst_42 : f32 to vector<2x8x16xf32>
    %103 = arith.select %101, %22, %102 : vector<2x8x16xi1>, vector<2x8x16xf32>
    %104 = arith.addf %96, %103 : vector<2x8x16xf32>
    %cst_43 = arith.constant 0xFF800000 : f32
    %105 = vector.broadcast %cst_43 : f32 to vector<2x8x1xf32>
    %106 = arith.select %99, %105, %17 : vector<2x8x1xi1>, vector<2x8x1xf32>
    %107 = arith.cmpf oeq, %26, %65 : vector<2x8x1xf32>
    %cst_44 = arith.constant 0.000000e+00 : f32
    %108 = vector.shape_cast %107 : vector<2x8x1xi1> to vector<2x8x1xi1>
    %109 = vector.broadcast %108 : vector<2x8x1xi1> to vector<2x8x16xi1>
    %110 = vector.broadcast %cst_44 : f32 to vector<2x8x16xf32>
    %111 = arith.select %109, %31, %110 : vector<2x8x16xi1>, vector<2x8x16xf32>
    %112 = arith.addf %104, %111 : vector<2x8x16xf32>
    %cst_45 = arith.constant 0xFF800000 : f32
    %113 = vector.broadcast %cst_45 : f32 to vector<2x8x1xf32>
    %114 = arith.select %107, %113, %26 : vector<2x8x1xi1>, vector<2x8x1xf32>
    %115 = arith.cmpf oeq, %35, %65 : vector<2x8x1xf32>
    %cst_46 = arith.constant 0.000000e+00 : f32
    %116 = vector.shape_cast %115 : vector<2x8x1xi1> to vector<2x8x1xi1>
    %117 = vector.broadcast %116 : vector<2x8x1xi1> to vector<2x8x16xi1>
    %118 = vector.broadcast %cst_46 : f32 to vector<2x8x16xf32>
    %119 = arith.select %117, %40, %118 : vector<2x8x16xi1>, vector<2x8x16xf32>
    %120 = arith.addf %112, %119 : vector<2x8x16xf32>
    %cst_47 = arith.constant 0xFF800000 : f32
    %121 = vector.broadcast %cst_47 : f32 to vector<2x8x1xf32>
    %122 = arith.select %115, %121, %35 : vector<2x8x1xi1>, vector<2x8x1xf32>
    %123 = arith.cmpf oeq, %44, %65 : vector<2x8x1xf32>
    %cst_48 = arith.constant 0.000000e+00 : f32
    %124 = vector.shape_cast %123 : vector<2x8x1xi1> to vector<2x8x1xi1>
    %125 = vector.broadcast %124 : vector<2x8x1xi1> to vector<2x8x16xi1>
    %126 = vector.broadcast %cst_48 : f32 to vector<2x8x16xf32>
    %127 = arith.select %125, %49, %126 : vector<2x8x16xi1>, vector<2x8x16xf32>
    %128 = arith.addf %120, %127 : vector<2x8x16xf32>
    %cst_49 = arith.constant 0xFF800000 : f32
    %129 = vector.broadcast %cst_49 : f32 to vector<2x8x1xf32>
    %130 = arith.select %123, %129, %44 : vector<2x8x1xi1>, vector<2x8x1xf32>
    %131 = arith.maximumf %74, %82 : vector<2x8x1xf32>
    %132 = arith.maximumf %131, %90 : vector<2x8x1xf32>
    %133 = arith.maximumf %132, %98 : vector<2x8x1xf32>
    %134 = arith.maximumf %133, %106 : vector<2x8x1xf32>
    %135 = arith.maximumf %134, %114 : vector<2x8x1xf32>
    %136 = arith.maximumf %135, %122 : vector<2x8x1xf32>
    %137 = arith.maximumf %136, %130 : vector<2x8x1xf32>
    %cst_50 = arith.constant 0.000000e+00 : f32
    %138 = vector.broadcast %cst_50 : f32 to vector<2x8x16xf32>
    %139 = arith.cmpf oeq, %74, %137 : vector<2x8x1xf32>
    %cst_51 = arith.constant 0.000000e+00 : f32
    %140 = vector.shape_cast %139 : vector<2x8x1xi1> to vector<2x8x1xi1>
    %141 = vector.broadcast %140 : vector<2x8x1xi1> to vector<2x8x16xi1>
    %142 = vector.broadcast %cst_51 : f32 to vector<2x8x16xf32>
    %143 = arith.select %141, %55, %142 : vector<2x8x16xi1>, vector<2x8x16xf32>
    %144 = arith.addf %138, %143 : vector<2x8x16xf32>
    %cst_52 = arith.constant 0xFF800000 : f32
    %145 = vector.broadcast %cst_52 : f32 to vector<2x8x1xf32>
    %146 = arith.select %139, %145, %74 : vector<2x8x1xi1>, vector<2x8x1xf32>
    %147 = arith.cmpf oeq, %82, %137 : vector<2x8x1xf32>
    %cst_53 = arith.constant 0.000000e+00 : f32
    %148 = vector.shape_cast %147 : vector<2x8x1xi1> to vector<2x8x1xi1>
    %149 = vector.broadcast %148 : vector<2x8x1xi1> to vector<2x8x16xi1>
    %150 = vector.broadcast %cst_53 : f32 to vector<2x8x16xf32>
    %151 = arith.select %149, %56, %150 : vector<2x8x16xi1>, vector<2x8x16xf32>
    %152 = arith.addf %144, %151 : vector<2x8x16xf32>
    %cst_54 = arith.constant 0xFF800000 : f32
    %153 = vector.broadcast %cst_54 : f32 to vector<2x8x1xf32>
    %154 = arith.select %147, %153, %82 : vector<2x8x1xi1>, vector<2x8x1xf32>
    %155 = arith.cmpf oeq, %90, %137 : vector<2x8x1xf32>
    %cst_55 = arith.constant 0.000000e+00 : f32
    %156 = vector.shape_cast %155 : vector<2x8x1xi1> to vector<2x8x1xi1>
    %157 = vector.broadcast %156 : vector<2x8x1xi1> to vector<2x8x16xi1>
    %158 = vector.broadcast %cst_55 : f32 to vector<2x8x16xf32>
    %159 = arith.select %157, %57, %158 : vector<2x8x16xi1>, vector<2x8x16xf32>
    %160 = arith.addf %152, %159 : vector<2x8x16xf32>
    %cst_56 = arith.constant 0xFF800000 : f32
    %161 = vector.broadcast %cst_56 : f32 to vector<2x8x1xf32>
    %162 = arith.select %155, %161, %90 : vector<2x8x1xi1>, vector<2x8x1xf32>
    %163 = arith.cmpf oeq, %98, %137 : vector<2x8x1xf32>
    %cst_57 = arith.constant 0.000000e+00 : f32
    %164 = vector.shape_cast %163 : vector<2x8x1xi1> to vector<2x8x1xi1>
    %165 = vector.broadcast %164 : vector<2x8x1xi1> to vector<2x8x16xi1>
    %166 = vector.broadcast %cst_57 : f32 to vector<2x8x16xf32>
    %167 = arith.select %165, %58, %166 : vector<2x8x16xi1>, vector<2x8x16xf32>
    %168 = arith.addf %160, %167 : vector<2x8x16xf32>
    %cst_58 = arith.constant 0xFF800000 : f32
    %169 = vector.broadcast %cst_58 : f32 to vector<2x8x1xf32>
    %170 = arith.select %163, %169, %98 : vector<2x8x1xi1>, vector<2x8x1xf32>
    %171 = arith.cmpf oeq, %106, %137 : vector<2x8x1xf32>
    %cst_59 = arith.constant 0.000000e+00 : f32
    %172 = vector.shape_cast %171 : vector<2x8x1xi1> to vector<2x8x1xi1>
    %173 = vector.broadcast %172 : vector<2x8x1xi1> to vector<2x8x16xi1>
    %174 = vector.broadcast %cst_59 : f32 to vector<2x8x16xf32>
    %175 = arith.select %173, %22, %174 : vector<2x8x16xi1>, vector<2x8x16xf32>
    %176 = arith.addf %168, %175 : vector<2x8x16xf32>
    %cst_60 = arith.constant 0xFF800000 : f32
    %177 = vector.broadcast %cst_60 : f32 to vector<2x8x1xf32>
    %178 = arith.select %171, %177, %106 : vector<2x8x1xi1>, vector<2x8x1xf32>
    %179 = arith.cmpf oeq, %114, %137 : vector<2x8x1xf32>
    %cst_61 = arith.constant 0.000000e+00 : f32
    %180 = vector.shape_cast %179 : vector<2x8x1xi1> to vector<2x8x1xi1>
    %181 = vector.broadcast %180 : vector<2x8x1xi1> to vector<2x8x16xi1>
    %182 = vector.broadcast %cst_61 : f32 to vector<2x8x16xf32>
    %183 = arith.select %181, %31, %182 : vector<2x8x16xi1>, vector<2x8x16xf32>
    %184 = arith.addf %176, %183 : vector<2x8x16xf32>
    %cst_62 = arith.constant 0xFF800000 : f32
    %185 = vector.broadcast %cst_62 : f32 to vector<2x8x1xf32>
    %186 = arith.select %179, %185, %114 : vector<2x8x1xi1>, vector<2x8x1xf32>
    %187 = arith.cmpf oeq, %122, %137 : vector<2x8x1xf32>
    %cst_63 = arith.constant 0.000000e+00 : f32
    %188 = vector.shape_cast %187 : vector<2x8x1xi1> to vector<2x8x1xi1>
    %189 = vector.broadcast %188 : vector<2x8x1xi1> to vector<2x8x16xi1>
    %190 = vector.broadcast %cst_63 : f32 to vector<2x8x16xf32>
    %191 = arith.select %189, %40, %190 : vector<2x8x16xi1>, vector<2x8x16xf32>
    %192 = arith.addf %184, %191 : vector<2x8x16xf32>
    %cst_64 = arith.constant 0xFF800000 : f32
    %193 = vector.broadcast %cst_64 : f32 to vector<2x8x1xf32>
    %194 = arith.select %187, %193, %122 : vector<2x8x1xi1>, vector<2x8x1xf32>
    %195 = arith.cmpf oeq, %130, %137 : vector<2x8x1xf32>
    %cst_65 = arith.constant 0.000000e+00 : f32
    %196 = vector.shape_cast %195 : vector<2x8x1xi1> to vector<2x8x1xi1>
    %197 = vector.broadcast %196 : vector<2x8x1xi1> to vector<2x8x16xi1>
    %198 = vector.broadcast %cst_65 : f32 to vector<2x8x16xf32>
    %199 = arith.select %197, %49, %198 : vector<2x8x16xi1>, vector<2x8x16xf32>
    %200 = arith.addf %192, %199 : vector<2x8x16xf32>
    %cst_66 = arith.constant 0xFF800000 : f32
    %201 = vector.broadcast %cst_66 : f32 to vector<2x8x1xf32>
    %202 = arith.select %195, %201, %130 : vector<2x8x1xi1>, vector<2x8x1xf32>
    %203 = arith.maximumf %146, %154 : vector<2x8x1xf32>
    %204 = arith.maximumf %203, %162 : vector<2x8x1xf32>
    %205 = arith.maximumf %204, %170 : vector<2x8x1xf32>
    %206 = arith.maximumf %205, %178 : vector<2x8x1xf32>
    %207 = arith.maximumf %206, %186 : vector<2x8x1xf32>
    %208 = arith.maximumf %207, %194 : vector<2x8x1xf32>
    %209 = arith.maximumf %208, %202 : vector<2x8x1xf32>
    %cst_67 = arith.constant 0.000000e+00 : f32
    %210 = vector.broadcast %cst_67 : f32 to vector<2x8x16xf32>
    %211 = arith.cmpf oeq, %146, %209 : vector<2x8x1xf32>
    %cst_68 = arith.constant 0.000000e+00 : f32
    %212 = vector.shape_cast %211 : vector<2x8x1xi1> to vector<2x8x1xi1>
    %213 = vector.broadcast %212 : vector<2x8x1xi1> to vector<2x8x16xi1>
    %214 = vector.broadcast %cst_68 : f32 to vector<2x8x16xf32>
    %215 = arith.select %213, %55, %214 : vector<2x8x16xi1>, vector<2x8x16xf32>
    %216 = arith.addf %210, %215 : vector<2x8x16xf32>
    %cst_69 = arith.constant 0xFF800000 : f32
    %217 = vector.broadcast %cst_69 : f32 to vector<2x8x1xf32>
    %218 = arith.select %211, %217, %146 : vector<2x8x1xi1>, vector<2x8x1xf32>
    %219 = arith.cmpf oeq, %154, %209 : vector<2x8x1xf32>
    %cst_70 = arith.constant 0.000000e+00 : f32
    %220 = vector.shape_cast %219 : vector<2x8x1xi1> to vector<2x8x1xi1>
    %221 = vector.broadcast %220 : vector<2x8x1xi1> to vector<2x8x16xi1>
    %222 = vector.broadcast %cst_70 : f32 to vector<2x8x16xf32>
    %223 = arith.select %221, %56, %222 : vector<2x8x16xi1>, vector<2x8x16xf32>
    %224 = arith.addf %216, %223 : vector<2x8x16xf32>
    %cst_71 = arith.constant 0xFF800000 : f32
    %225 = vector.broadcast %cst_71 : f32 to vector<2x8x1xf32>
    %226 = arith.select %219, %225, %154 : vector<2x8x1xi1>, vector<2x8x1xf32>
    %227 = arith.cmpf oeq, %162, %209 : vector<2x8x1xf32>
    %cst_72 = arith.constant 0.000000e+00 : f32
    %228 = vector.shape_cast %227 : vector<2x8x1xi1> to vector<2x8x1xi1>
    %229 = vector.broadcast %228 : vector<2x8x1xi1> to vector<2x8x16xi1>
    %230 = vector.broadcast %cst_72 : f32 to vector<2x8x16xf32>
    %231 = arith.select %229, %57, %230 : vector<2x8x16xi1>, vector<2x8x16xf32>
    %232 = arith.addf %224, %231 : vector<2x8x16xf32>
    %cst_73 = arith.constant 0xFF800000 : f32
    %233 = vector.broadcast %cst_73 : f32 to vector<2x8x1xf32>
    %234 = arith.select %227, %233, %162 : vector<2x8x1xi1>, vector<2x8x1xf32>
    %235 = arith.cmpf oeq, %170, %209 : vector<2x8x1xf32>
    %cst_74 = arith.constant 0.000000e+00 : f32
    %236 = vector.shape_cast %235 : vector<2x8x1xi1> to vector<2x8x1xi1>
    %237 = vector.broadcast %236 : vector<2x8x1xi1> to vector<2x8x16xi1>
    %238 = vector.broadcast %cst_74 : f32 to vector<2x8x16xf32>
    %239 = arith.select %237, %58, %238 : vector<2x8x16xi1>, vector<2x8x16xf32>
    %240 = arith.addf %232, %239 : vector<2x8x16xf32>
    %cst_75 = arith.constant 0xFF800000 : f32
    %241 = vector.broadcast %cst_75 : f32 to vector<2x8x1xf32>
    %242 = arith.select %235, %241, %170 : vector<2x8x1xi1>, vector<2x8x1xf32>
    %243 = arith.cmpf oeq, %178, %209 : vector<2x8x1xf32>
    %cst_76 = arith.constant 0.000000e+00 : f32
    %244 = vector.shape_cast %243 : vector<2x8x1xi1> to vector<2x8x1xi1>
    %245 = vector.broadcast %244 : vector<2x8x1xi1> to vector<2x8x16xi1>
    %246 = vector.broadcast %cst_76 : f32 to vector<2x8x16xf32>
    %247 = arith.select %245, %22, %246 : vector<2x8x16xi1>, vector<2x8x16xf32>
    %248 = arith.addf %240, %247 : vector<2x8x16xf32>
    %cst_77 = arith.constant 0xFF800000 : f32
    %249 = vector.broadcast %cst_77 : f32 to vector<2x8x1xf32>
    %250 = arith.select %243, %249, %178 : vector<2x8x1xi1>, vector<2x8x1xf32>
    %251 = arith.cmpf oeq, %186, %209 : vector<2x8x1xf32>
    %cst_78 = arith.constant 0.000000e+00 : f32
    %252 = vector.shape_cast %251 : vector<2x8x1xi1> to vector<2x8x1xi1>
    %253 = vector.broadcast %252 : vector<2x8x1xi1> to vector<2x8x16xi1>
    %254 = vector.broadcast %cst_78 : f32 to vector<2x8x16xf32>
    %255 = arith.select %253, %31, %254 : vector<2x8x16xi1>, vector<2x8x16xf32>
    %256 = arith.addf %248, %255 : vector<2x8x16xf32>
    %cst_79 = arith.constant 0xFF800000 : f32
    %257 = vector.broadcast %cst_79 : f32 to vector<2x8x1xf32>
    %258 = arith.select %251, %257, %186 : vector<2x8x1xi1>, vector<2x8x1xf32>
    %259 = arith.cmpf oeq, %194, %209 : vector<2x8x1xf32>
    %cst_80 = arith.constant 0.000000e+00 : f32
    %260 = vector.shape_cast %259 : vector<2x8x1xi1> to vector<2x8x1xi1>
    %261 = vector.broadcast %260 : vector<2x8x1xi1> to vector<2x8x16xi1>
    %262 = vector.broadcast %cst_80 : f32 to vector<2x8x16xf32>
    %263 = arith.select %261, %40, %262 : vector<2x8x16xi1>, vector<2x8x16xf32>
    %264 = arith.addf %256, %263 : vector<2x8x16xf32>
    %cst_81 = arith.constant 0xFF800000 : f32
    %265 = vector.broadcast %cst_81 : f32 to vector<2x8x1xf32>
    %266 = arith.select %259, %265, %194 : vector<2x8x1xi1>, vector<2x8x1xf32>
    %267 = arith.cmpf oeq, %202, %209 : vector<2x8x1xf32>
    %cst_82 = arith.constant 0.000000e+00 : f32
    %268 = vector.shape_cast %267 : vector<2x8x1xi1> to vector<2x8x1xi1>
    %269 = vector.broadcast %268 : vector<2x8x1xi1> to vector<2x8x16xi1>
    %270 = vector.broadcast %cst_82 : f32 to vector<2x8x16xf32>
    %271 = arith.select %269, %49, %270 : vector<2x8x16xi1>, vector<2x8x16xf32>
    %272 = arith.addf %264, %271 : vector<2x8x16xf32>
    %cst_83 = arith.constant 0xFF800000 : f32
    %273 = vector.broadcast %cst_83 : f32 to vector<2x8x1xf32>
    %274 = arith.select %267, %273, %202 : vector<2x8x1xi1>, vector<2x8x1xf32>
    %275 = arith.maximumf %218, %226 : vector<2x8x1xf32>
    %276 = arith.maximumf %275, %234 : vector<2x8x1xf32>
    %277 = arith.maximumf %276, %242 : vector<2x8x1xf32>
    %278 = arith.maximumf %277, %250 : vector<2x8x1xf32>
    %279 = arith.maximumf %278, %258 : vector<2x8x1xf32>
    %280 = arith.maximumf %279, %266 : vector<2x8x1xf32>
    %281 = arith.maximumf %280, %274 : vector<2x8x1xf32>
    %cst_84 = arith.constant 0.000000e+00 : f32
    %282 = vector.broadcast %cst_84 : f32 to vector<2x8x16xf32>
    %283 = arith.cmpf oeq, %218, %281 : vector<2x8x1xf32>
    %cst_85 = arith.constant 0.000000e+00 : f32
    %284 = vector.shape_cast %283 : vector<2x8x1xi1> to vector<2x8x1xi1>
    %285 = vector.broadcast %284 : vector<2x8x1xi1> to vector<2x8x16xi1>
    %286 = vector.broadcast %cst_85 : f32 to vector<2x8x16xf32>
    %287 = arith.select %285, %55, %286 : vector<2x8x16xi1>, vector<2x8x16xf32>
    %288 = arith.addf %282, %287 : vector<2x8x16xf32>
    %289 = arith.cmpf oeq, %226, %281 : vector<2x8x1xf32>
    %cst_86 = arith.constant 0.000000e+00 : f32
    %290 = vector.shape_cast %289 : vector<2x8x1xi1> to vector<2x8x1xi1>
    %291 = vector.broadcast %290 : vector<2x8x1xi1> to vector<2x8x16xi1>
    %292 = vector.broadcast %cst_86 : f32 to vector<2x8x16xf32>
    %293 = arith.select %291, %56, %292 : vector<2x8x16xi1>, vector<2x8x16xf32>
    %294 = arith.addf %288, %293 : vector<2x8x16xf32>
    %295 = arith.cmpf oeq, %234, %281 : vector<2x8x1xf32>
    %cst_87 = arith.constant 0.000000e+00 : f32
    %296 = vector.shape_cast %295 : vector<2x8x1xi1> to vector<2x8x1xi1>
    %297 = vector.broadcast %296 : vector<2x8x1xi1> to vector<2x8x16xi1>
    %298 = vector.broadcast %cst_87 : f32 to vector<2x8x16xf32>
    %299 = arith.select %297, %57, %298 : vector<2x8x16xi1>, vector<2x8x16xf32>
    %300 = arith.addf %294, %299 : vector<2x8x16xf32>
    %301 = arith.cmpf oeq, %242, %281 : vector<2x8x1xf32>
    %cst_88 = arith.constant 0.000000e+00 : f32
    %302 = vector.shape_cast %301 : vector<2x8x1xi1> to vector<2x8x1xi1>
    %303 = vector.broadcast %302 : vector<2x8x1xi1> to vector<2x8x16xi1>
    %304 = vector.broadcast %cst_88 : f32 to vector<2x8x16xf32>
    %305 = arith.select %303, %58, %304 : vector<2x8x16xi1>, vector<2x8x16xf32>
    %306 = arith.addf %300, %305 : vector<2x8x16xf32>
    %307 = arith.cmpf oeq, %250, %281 : vector<2x8x1xf32>
    %cst_89 = arith.constant 0.000000e+00 : f32
    %308 = vector.shape_cast %307 : vector<2x8x1xi1> to vector<2x8x1xi1>
    %309 = vector.broadcast %308 : vector<2x8x1xi1> to vector<2x8x16xi1>
    %310 = vector.broadcast %cst_89 : f32 to vector<2x8x16xf32>
    %311 = arith.select %309, %22, %310 : vector<2x8x16xi1>, vector<2x8x16xf32>
    %312 = arith.addf %306, %311 : vector<2x8x16xf32>
    %313 = arith.cmpf oeq, %258, %281 : vector<2x8x1xf32>
    %cst_90 = arith.constant 0.000000e+00 : f32
    %314 = vector.shape_cast %313 : vector<2x8x1xi1> to vector<2x8x1xi1>
    %315 = vector.broadcast %314 : vector<2x8x1xi1> to vector<2x8x16xi1>
    %316 = vector.broadcast %cst_90 : f32 to vector<2x8x16xf32>
    %317 = arith.select %315, %31, %316 : vector<2x8x16xi1>, vector<2x8x16xf32>
    %318 = arith.addf %312, %317 : vector<2x8x16xf32>
    %319 = arith.cmpf oeq, %266, %281 : vector<2x8x1xf32>
    %cst_91 = arith.constant 0.000000e+00 : f32
    %320 = vector.shape_cast %319 : vector<2x8x1xi1> to vector<2x8x1xi1>
    %321 = vector.broadcast %320 : vector<2x8x1xi1> to vector<2x8x16xi1>
    %322 = vector.broadcast %cst_91 : f32 to vector<2x8x16xf32>
    %323 = arith.select %321, %40, %322 : vector<2x8x16xi1>, vector<2x8x16xf32>
    %324 = arith.addf %318, %323 : vector<2x8x16xf32>
    %325 = arith.cmpf oeq, %274, %281 : vector<2x8x1xf32>
    %cst_92 = arith.constant 0.000000e+00 : f32
    %326 = vector.shape_cast %325 : vector<2x8x1xi1> to vector<2x8x1xi1>
    %327 = vector.broadcast %326 : vector<2x8x1xi1> to vector<2x8x16xi1>
    %328 = vector.broadcast %cst_92 : f32 to vector<2x8x16xf32>
    %329 = arith.select %327, %49, %328 : vector<2x8x16xi1>, vector<2x8x16xf32>
    %330 = arith.addf %324, %329 : vector<2x8x16xf32>
    %331 = tpu.concatenate %65, %137, %209, %281 in 2 : vector<2x8x1xf32>, vector<2x8x1xf32>, vector<2x8x1xf32>, vector<2x8x1xf32> -> vector<2x8x4xf32>
    %c0_93 = arith.constant 0 : index
    %c0_94 = arith.constant 0 : index
    %c0_95 = arith.constant 0 : index
    %332 = vector.load %arg12[%c0_93, %c0_94, %c0_95] : memref<2x8x4xf32, #tpu.memory_space<vmem>>, vector<2x8x4xf32>
    tpu.vector_store %arg12[%c0_93, %c0_94, %c0_95], %331 {strides = array<i32>} : memref<2x8x4xf32, #tpu.memory_space<vmem>>, vector<2x8x4xf32>,
    %c0_96 = arith.constant 0 : index
    %c0_97 = arith.constant 0 : index
    %c0_98 = arith.constant 0 : index
    %333 = vector.load %arg13[%c0_96, %c0_97, %c0_98] : memref<2x8x16xf32, #tpu.memory_space<vmem>>, vector<2x8x16xf32>
    tpu.vector_store %arg13[%c0_96, %c0_97, %c0_98], %128 {strides = array<i32>} : memref<2x8x16xf32, #tpu.memory_space<vmem>>, vector<2x8x16xf32>,
    %c0_99 = arith.constant 0 : index
    %c0_100 = arith.constant 0 : index
    %c0_101 = arith.constant 0 : index
    %334 = vector.load %arg14[%c0_99, %c0_100, %c0_101] : memref<2x8x16xf32, #tpu.memory_space<vmem>>, vector<2x8x16xf32>
    tpu.vector_store %arg14[%c0_99, %c0_100, %c0_101], %200 {strides = array<i32>} : memref<2x8x16xf32, #tpu.memory_space<vmem>>, vector<2x8x16xf32>,
    %c0_102 = arith.constant 0 : index
    %c0_103 = arith.constant 0 : index
    %c0_104 = arith.constant 0 : index
    %335 = vector.load %arg15[%c0_102, %c0_103, %c0_104] : memref<2x8x16xf32, #tpu.memory_space<vmem>>, vector<2x8x16xf32>
    tpu.vector_store %arg15[%c0_102, %c0_103, %c0_104], %272 {strides = array<i32>} : memref<2x8x16xf32, #tpu.memory_space<vmem>>, vector<2x8x16xf32>,
    %c0_105 = arith.constant 0 : index
    %c0_106 = arith.constant 0 : index
    %c0_107 = arith.constant 0 : index
    %336 = vector.load %arg16[%c0_105, %c0_106, %c0_107] : memref<2x8x16xf32, #tpu.memory_space<vmem>>, vector<2x8x16xf32>
    tpu.vector_store %arg16[%c0_105, %c0_106, %c0_107], %330 {strides = array<i32>} : memref<2x8x16xf32, #tpu.memory_space<vmem>>, vector<2x8x16xf32>,
    %c1_i32 = arith.constant 1 : i32
    %337 = arith.cmpi eq, %arg1, %c1_i32 : i32
    %338 = arith.extui %337 : i1 to i32
    %c0_i32_108 = arith.constant 0 : i32
    %339 = arith.cmpi ne, %338, %c0_i32_108 : i32
    scf.if %339 {
      %c0_109 = arith.constant 0 : index
      %c0_110 = arith.constant 0 : index
      %c0_111 = arith.constant 0 : index
      %340 = vector.load %arg12[%c0_109, %c0_110, %c0_111] : memref<2x8x4xf32, #tpu.memory_space<vmem>>, vector<2x8x4xf32>
      %341 = math.exp %340 : vector<2x8x4xf32>
      %cst_112 = arith.constant dense<0xFF800000> : vector<2x8xf32>
      %342 = vector.multi_reduction <maximumf>, %341, %cst_112 [2] : vector<2x8x4xf32> to vector<2x8xf32>
      %343 = vector.shape_cast %342 : vector<2x8xf32> to vector<2x8x1xf32>
      %344 = vector.broadcast %343 : vector<2x8x1xf32> to vector<2x8x4xf32>
      %345 = arith.subf %341, %344 : vector<2x8x4xf32>
      %346 = math.exp %345 : vector<2x8x4xf32>
      %cst_113 = arith.constant dense<0.000000e+00> : vector<2x8xf32>
      %347 = vector.multi_reduction <add>, %346, %cst_113 [2] : vector<2x8x4xf32> to vector<2x8xf32>
      %348 = vector.shape_cast %347 : vector<2x8xf32> to vector<2x8x1xf32>
      %349 = vector.broadcast %348 : vector<2x8x1xf32> to vector<2x8x4xf32>
      %350 = arith.divf %346, %349 : vector<2x8x4xf32>
      %cst_114 = arith.constant 0.000000e+00 : f32
      %351 = vector.broadcast %cst_114 : f32 to vector<2x8x16xf32>
      %352 = vector.extract_strided_slice %350 {offsets = [0, 0, 0], sizes = [2, 8, 1], strides = [1, 1, 1]} : vector<2x8x4xf32> to vector<2x8x1xf32>
      %c0_115 = arith.constant 0 : index
      %c0_116 = arith.constant 0 : index
      %c0_117 = arith.constant 0 : index
      %353 = vector.load %arg13[%c0_115, %c0_116, %c0_117] : memref<2x8x16xf32, #tpu.memory_space<vmem>>, vector<2x8x16xf32>
      %354 = vector.broadcast %352 : vector<2x8x1xf32> to vector<2x8x16xf32>
      %355 = arith.mulf %354, %353 : vector<2x8x16xf32>
      %356 = arith.addf %351, %355 : vector<2x8x16xf32>
      %357 = vector.extract_strided_slice %350 {offsets = [0, 0, 1], sizes = [2, 8, 1], strides = [1, 1, 1]} : vector<2x8x4xf32> to vector<2x8x1xf32>
      %c0_118 = arith.constant 0 : index
      %c0_119 = arith.constant 0 : index
      %c0_120 = arith.constant 0 : index
      %358 = vector.load %arg14[%c0_118, %c0_119, %c0_120] : memref<2x8x16xf32, #tpu.memory_space<vmem>>, vector<2x8x16xf32>
      %359 = vector.broadcast %357 : vector<2x8x1xf32> to vector<2x8x16xf32>
      %360 = arith.mulf %359, %358 : vector<2x8x16xf32>
      %361 = arith.addf %356, %360 : vector<2x8x16xf32>
      %362 = vector.extract_strided_slice %350 {offsets = [0, 0, 2], sizes = [2, 8, 1], strides = [1, 1, 1]} : vector<2x8x4xf32> to vector<2x8x1xf32>
      %c0_121 = arith.constant 0 : index
      %c0_122 = arith.constant 0 : index
      %c0_123 = arith.constant 0 : index
      %363 = vector.load %arg15[%c0_121, %c0_122, %c0_123] : memref<2x8x16xf32, #tpu.memory_space<vmem>>, vector<2x8x16xf32>
      %364 = vector.broadcast %362 : vector<2x8x1xf32> to vector<2x8x16xf32>
      %365 = arith.mulf %364, %363 : vector<2x8x16xf32>
      %366 = arith.addf %361, %365 : vector<2x8x16xf32>
      %367 = vector.extract_strided_slice %350 {offsets = [0, 0, 3], sizes = [2, 8, 1], strides = [1, 1, 1]} : vector<2x8x4xf32> to vector<2x8x1xf32>
      %c0_124 = arith.constant 0 : index
      %c0_125 = arith.constant 0 : index
      %c0_126 = arith.constant 0 : index
      %368 = vector.load %arg16[%c0_124, %c0_125, %c0_126] : memref<2x8x16xf32, #tpu.memory_space<vmem>>, vector<2x8x16xf32>
      %369 = vector.broadcast %367 : vector<2x8x1xf32> to vector<2x8x16xf32>
      %370 = arith.mulf %369, %368 : vector<2x8x16xf32>
      %371 = arith.addf %366, %370 : vector<2x8x16xf32>
      %372 = vector.extract_strided_slice %371 {offsets = [0, 0, 0], sizes = [1, 8, 16], strides = [1, 1, 1]} : vector<2x8x16xf32> to vector<1x8x16xf32>
      %373 = vector.shape_cast %372 : vector<1x8x16xf32> to vector<8x16xf32>
      %374 = vector.extract_strided_slice %371 {offsets = [1, 0, 0], sizes = [1, 8, 16], strides = [1, 1, 1]} : vector<2x8x16xf32> to vector<1x8x16xf32>
      %375 = vector.shape_cast %374 : vector<1x8x16xf32> to vector<8x16xf32>
      %376 = tpu.concatenate %373, %375 in 1 : vector<8x16xf32>, vector<8x16xf32> -> vector<8x32xf32>
      %c0_127 = arith.constant 0 : index
      %c0_128 = arith.constant 0 : index
      %377 = vector.load %arg8[%c0_127, %c0_128] : memref<32x128xf32, #tpu.memory_space<vmem>>, vector<32x128xf32>
      %cst_129 = arith.constant dense<0.000000e+00> : vector<8x128xf32>
      %378 = tpu.matmul %376, %377, %cst_129 {dimension_numbers = #tpu.dot_dimension_numbers<[1], [0], [0], [1], [0, 0, 1, 1], [], []>} : vector<8x32xf32>, vector<32x128xf32>, vector<8x128xf32> -> vector<8x128xf32>
      %c0_130 = arith.constant 0 : index
      %c0_131 = arith.constant 0 : index
      %379 = vector.load %arg9[%c0_130, %c0_131] : memref<1x128xf32, #tpu.memory_space<vmem>>, vector<1x128xf32>
      %380 = vector.broadcast %379 : vector<1x128xf32> to vector<8x128xf32>
      %381 = arith.addf %378, %380 : vector<8x128xf32>
      %c0_132 = arith.constant 0 : index
      %c0_133 = arith.constant 0 : index
      %382 = vector.load %arg10[%c0_132, %c0_133] : memref<8x128xf32, #tpu.memory_space<vmem>>, vector<8x128xf32>
      tpu.vector_store %arg10[%c0_132, %c0_133], %381 {strides = array<i32>} : memref<8x128xf32, #tpu.memory_space<vmem>>, vector<8x128xf32>,
    } else {
    }
    return
  }
  func.func @transform_0(%arg0: i32, %arg1: i32) -> (i32, i32) {
    %c0_i32 = arith.constant 0 : i32
    %c0_i32_0 = arith.constant 0 : i32
    return %arg0, %c0_i32 : i32, i32
  }
  func.func @transform_1(%arg0: i32, %arg1: i32) -> (i32, i32) {
    %c0_i32 = arith.constant 0 : i32
    %c0_i32_0 = arith.constant 0 : i32
    %c0_i32_1 = arith.constant 0 : i32
    return %c0_i32, %c0_i32_0 : i32, i32
  }
  func.func @transform_2(%arg0: i32, %arg1: i32) -> (i32, i32) {
    %c0_i32 = arith.constant 0 : i32
    %c0_i32_0 = arith.constant 0 : i32
    %c0_i32_1 = arith.constant 0 : i32
    return %c0_i32, %c0_i32_0 : i32, i32
  }
  func.func @transform_3(%arg0: i32, %arg1: i32) -> (i32, i32, i32) {
    %c0_i32 = arith.constant 0 : i32
    %c0_i32_0 = arith.constant 0 : i32
    %c0_i32_1 = arith.constant 0 : i32
    %c0_i32_2 = arith.constant 0 : i32
    return %c0_i32, %c0_i32_0, %c0_i32_1 : i32, i32, i32
  }
  func.func @transform_4(%arg0: i32, %arg1: i32) -> (i32, i32, i32) {
    %c0_i32 = arith.constant 0 : i32
    %c0_i32_0 = arith.constant 0 : i32
    %c0_i32_1 = arith.constant 0 : i32
    %c0_i32_2 = arith.constant 0 : i32
    return %c0_i32, %c0_i32_0, %c0_i32_1 : i32, i32, i32
  }
  func.func @transform_5(%arg0: i32, %arg1: i32) -> (i32, i32) {
    %c0_i32 = arith.constant 0 : i32
    %c0_i32_0 = arith.constant 0 : i32
    return %arg1, %c0_i32 : i32, i32
  }
  func.func @transform_6(%arg0: i32, %arg1: i32) -> (i32, i32) {
    %c0_i32 = arith.constant 0 : i32
    %c0_i32_0 = arith.constant 0 : i32
    %c0_i32_1 = arith.constant 0 : i32
    return %c0_i32, %c0_i32_0 : i32, i32
  }
  func.func @transform_7(%arg0: i32, %arg1: i32) -> (i32, i32) {
    %c0_i32 = arith.constant 0 : i32
    %c0_i32_0 = arith.constant 0 : i32
    %c0_i32_1 = arith.constant 0 : i32
    return %c0_i32, %c0_i32_0 : i32, i32
  }
  func.func @transform_8(%arg0: i32, %arg1: i32) -> (i32, i32) {
    %c0_i32 = arith.constant 0 : i32
    %c0_i32_0 = arith.constant 0 : i32
    return %arg0, %c0_i32 : i32, i32
  }
}

</mosaic_0001>

<llo_original>
// kernel: tpu_custom_call.1
$region0: #{tpu_custom_call.1}
  #allocation0 [shape = 'u32[]', space=smem, size = 0x4, offset = 0x4, fixed_abs, tag = 'smem constant byte address 0x4 - core index']
  #allocation1 [shape = 'u32[72,128]{1,0:T(1,128)}', space=vmem, size = 0x9000, scoped, tag = 'internal scratch']
  #allocation2 [shape = 'f32[2,8,16]{2,1,0:T(8,128)}', space=vmem, size = 0x2000, scoped, tag = 'scratch operand']
  #allocation3 [shape = 'f32[2,8,4]{2,1,0:T(8,128)}', space=vmem, size = 0x2000, scoped, tag = 'scratch operand']
  #allocation4 [shape = 'f32[2,8,16]{2,1,0:T(8,128)}', space=vmem, size = 0x2000, scoped, tag = 'scratch operand']
  #allocation5 [shape = 'f32[2,8,16]{2,1,0:T(8,128)}', space=vmem, size = 0x2000, scoped, tag = 'scratch operand']
  #allocation6 [shape = 'f32[2,8,16]{2,1,0:T(8,128)}', space=vmem, size = 0x2000, scoped, tag = 'scratch operand']
  #allocation7 [shape = 'f32[2,8,16]{2,1,0:T(8,128)}', space=vmem, size = 0x2000, scoped, tag = 'scratch operand']
  %s0 = inlined_call_operand.vmem [shape: f32[16,32], index: 0, kind: input, shape index: {}]
  %s1 = inlined_call_operand.vmem [shape: f32[32,64], index: 1, kind: input, shape index: {}]
  %s2 = inlined_call_operand.vmem [shape: f32[1,64], index: 2, kind: input, shape index: {}]
  %s3 = inlined_call_operand.vmem [shape: f32[2,32,16], index: 3, kind: input, shape index: {}]
  %s4 = inlined_call_operand.vmem [shape: f32[2,1,16], index: 4, kind: input, shape index: {}]
  %s5 = inlined_call_operand.vmem [shape: f32[256,16], index: 5, kind: input, shape index: {}]
  %s6 = inlined_call_operand.vmem [shape: f32[32,128], index: 6, kind: input, shape index: {}]
  %s7 = inlined_call_operand.vmem [shape: f32[1,128], index: 7, kind: input, shape index: {}]
  %s8 = inlined_call_operand.hbm [shape: f32[16,128], index: 8, kind: output, shape index: {}]
  %s9 = sld [smem:[#allocation0]]
  $region73: #{tpu_custom_call.1} parent=0
    _
  %s11 = ssub.s32 1, %s9
  %s12 = scalar_select 0, %s11, %s9
  $region1: #{tpu_custom_call.1} parent=0
    #allocation8 [shape = 'u8[8192]{0}', space=vmem, size = 0x2000, scoped, tag = 'output window, operand 0']
    #allocation9 [shape = 's32[2]{0}', space=sflag, size = 0x8, scoped, tag = 'scoped memory for tpu_custom_call.1']
    %13 = vsyncpa [#allocation9], 0
    %s14 = scalar_lea.sflag [#allocation9], 1
    %15 = vsyncpa %s14, 0
    loop: start=0, step=1, limit=6
    $region2: #{tpu_custom_call.1} parent=1 // loop_pre_header
      _
    $region3: #{tpu_custom_call.1} parent=1 // loop_header
      %s17 = sphi 0, %s21
      %p18 = scmp.ge.s32.totalorder %s17, 6
      %s24 = sphi 0, %s36
      %s25 = sphi 0, %s32
      %s26 = sphi 0, %s24
      %s27 = sphi 0, %s25
      %s28 = sphi 0, %s26
      %s29 = sphi 0, %s27
      %s39 = sphi 0, %s41
      %s42 = sphi 0, %s39
      %s43 = sphi 0, %s42
      %s59 = sphi 0, %s43
      %s63 = sphi 0, %s63
      %s65 = sphi 0, %s63
      %s66 = sphi 0, %s65
      %s80 = sphi 0, %s66
      %s84 = sphi 0, %s84
      %s86 = sphi 0, %s84
      %s87 = sphi 0, %s86
      %s101 = sphi 0, %s87
      %s105 = sphi 0, %s105
      %s107 = sphi 0, %s105
      %s108 = sphi 0, %s107
      %s122 = sphi 0, %s108
      %s126 = sphi 0, %s126
      %s128 = sphi 0, %s126
      %s129 = sphi 0, %s128
      %s143 = sphi 0, %s129
      %s149 = sphi 0, %s151
      %s152 = sphi 0, %s149
      %s153 = sphi 0, %s152
      %s169 = sphi 0, %s153
      %s173 = sphi 0, %s173
      %s175 = sphi 0, %s173
      %s176 = sphi 0, %s175
      %s190 = sphi 0, %s176
      %s194 = sphi 0, %s194
      %s196 = sphi 0, %s194
      %s197 = sphi 0, %s196
      %s211 = sphi 0, %s197
      %s217 = sphi 0, %s219
      %s220 = sphi 0, %s217
      %s221 = sphi 0, %s220
      %s237 = sphi 0, %s221
    $region4: #{tpu_custom_call.1} parent=1 // loop_header_branch
      %20 = sbr.rel (%p18) target = $region8
    $region5: #{tpu_custom_call.1} parent=1 // loop_body
      %s22 = ssub.s32 %s17, 1
      %s23 = ssub.s32 %s17, 2
      %s30 = sadd.s32 1, %s25
      %p31 = scmp.ge.s32.totalorder %s30, 2
      %s32 = scalar_select %p31, 0, %s30
      %s33 = sadd.s32 1, %s24
      %s34 = scalar_select %p31, %s33, %s24
      %p35 = scmp.ge.s32.totalorder %s34, 2
      %s36 = scalar_select %p35, 0, %s34
      %s37 = ssub.s32 %s24, %s36
      %p38 = scmp.eq.s32.totalorder %s37, 0
      %s40 = sadd.s32 %s39, 1
      %s41 = scalar_select %p38, %s39, %s40
      %p44 = pneg %p38
      %p45 = scmp.eq.s32.totalorder %s17, 3
      %p46 = por %p44, %p45
      %p47 = scmp.ne.s32.totalorder %s39, %s42
      %p48 = scmp.eq.s32.totalorder %s17, 0
      %p49 = por %p47, %p48
      %p50 = scmp.ne.s32.totalorder %s39, %s42
      %p51 = scmp.eq.s32.totalorder %s22, 3
      %p52 = por %p50, %p51
      %p53 = scmp.ne.s32.totalorder %s42, %s43
      %p54 = scmp.eq.s32.totalorder %s22, 0
      %p55 = por %p53, %p54
      %p56 = scmp.ne.s32.totalorder %s42, %s43
      %p57 = scmp.eq.s32.totalorder %s23, 3
      %p58 = por %p56, %p57
      %p60 = scmp.ne.s32.totalorder %s43, %s59
      %p61 = scmp.eq.s32.totalorder %s23, 0
      %p62 = por %p60, %p61
      %s64 = sadd.s32 %s63, 1
      %p67 = scmp.eq.s32.totalorder %s17, 3
      %p68 = scmp.ne.s32.totalorder %s63, %s65
      %p69 = scmp.eq.s32.totalorder %s17, 0
      %p70 = por %p68, %p69
      %p71 = scmp.ne.s32.totalorder %s63, %s65
      %p72 = scmp.eq.s32.totalorder %s22, 3
      %p73 = por %p71, %p72
      %p74 = scmp.ne.s32.totalorder %s65, %s66
      %p75 = scmp.eq.s32.totalorder %s22, 0
      %p76 = por %p74, %p75
      %p77 = scmp.ne.s32.totalorder %s65, %s66
      %p78 = scmp.eq.s32.totalorder %s23, 3
      %p79 = por %p77, %p78
      %p81 = scmp.ne.s32.totalorder %s66, %s80
      %p82 = scmp.eq.s32.totalorder %s23, 0
      %p83 = por %p81, %p82
      %s85 = sadd.s32 %s84, 1
      %p88 = scmp.eq.s32.totalorder %s17, 3
      %p89 = scmp.ne.s32.totalorder %s84, %s86
      %p90 = scmp.eq.s32.totalorder %s17, 0
      %p91 = por %p89, %p90
      %p92 = scmp.ne.s32.totalorder %s84, %s86
      %p93 = scmp.eq.s32.totalorder %s22, 3
      %p94 = por %p92, %p93
      %p95 = scmp.ne.s32.totalorder %s86, %s87
      %p96 = scmp.eq.s32.totalorder %s22, 0
      %p97 = por %p95, %p96
      %p98 = scmp.ne.s32.totalorder %s86, %s87
      %p99 = scmp.eq.s32.totalorder %s23, 3
      %p100 = por %p98, %p99
      %p102 = scmp.ne.s32.totalorder %s87, %s101
      %p103 = scmp.eq.s32.totalorder %s23, 0
      %p104 = por %p102, %p103
      %s106 = sadd.s32 %s105, 1
      %p109 = scmp.eq.s32.totalorder %s17, 3
      %p110 = scmp.ne.s32.totalorder %s105, %s107
      %p111 = scmp.eq.s32.totalorder %s17, 0
      %p112 = por %p110, %p111
      %p113 = scmp.ne.s32.totalorder %s105, %s107
      %p114 = scmp.eq.s32.totalorder %s22, 3
      %p115 = por %p113, %p114
      %p116 = scmp.ne.s32.totalorder %s107, %s108
      %p117 = scmp.eq.s32.totalorder %s22, 0
      %p118 = por %p116, %p117
      %p119 = scmp.ne.s32.totalorder %s107, %s108
      %p120 = scmp.eq.s32.totalorder %s23, 3
      %p121 = por %p119, %p120
      %p123 = scmp.ne.s32.totalorder %s108, %s122
      %p124 = scmp.eq.s32.totalorder %s23, 0
      %p125 = por %p123, %p124
      %s127 = sadd.s32 %s126, 1
      %p130 = scmp.eq.s32.totalorder %s17, 3
      %p131 = scmp.ne.s32.totalorder %s126, %s128
      %p132 = scmp.eq.s32.totalorder %s17, 0
      %p133 = por %p131, %p132
      %p134 = scmp.ne.s32.totalorder %s126, %s128
      %p135 = scmp.eq.s32.totalorder %s22, 3
      %p136 = por %p134, %p135
      %p137 = scmp.ne.s32.totalorder %s128, %s129
      %p138 = scmp.eq.s32.totalorder %s22, 0
      %p139 = por %p137, %p138
      %p140 = scmp.ne.s32.totalorder %s128, %s129
      %p141 = scmp.eq.s32.totalorder %s23, 3
      %p142 = por %p140, %p141
      %p144 = scmp.ne.s32.totalorder %s129, %s143
      %p145 = scmp.eq.s32.totalorder %s23, 0
      %p146 = por %p144, %p145
      %s147 = ssub.s32 %s25, %s32
      %p148 = scmp.eq.s32.totalorder %s147, 0
      %s150 = sadd.s32 %s149, 1
      %s151 = scalar_select %p148, %s149, %s150
      %p154 = pneg %p148
      %p155 = scmp.eq.s32.totalorder %s17, 3
      %p156 = por %p154, %p155
      %p157 = scmp.ne.s32.totalorder %s149, %s152
      %p158 = scmp.eq.s32.totalorder %s17, 0
      %p159 = por %p157, %p158
      %p160 = scmp.ne.s32.totalorder %s149, %s152
      %p161 = scmp.eq.s32.totalorder %s22, 3
      %p162 = por %p160, %p161
      %p163 = scmp.ne.s32.totalorder %s152, %s153
      %p164 = scmp.eq.s32.totalorder %s22, 0
      %p165 = por %p163, %p164
      %p166 = scmp.ne.s32.totalorder %s152, %s153
      %p167 = scmp.eq.s32.totalorder %s23, 3
      %p168 = por %p166, %p167
      %p170 = scmp.ne.s32.totalorder %s153, %s169
      %p171 = scmp.eq.s32.totalorder %s23, 0
      %p172 = por %p170, %p171
      %s174 = sadd.s32 %s173, 1
      %p177 = scmp.eq.s32.totalorder %s17, 3
      %p178 = scmp.ne.s32.totalorder %s173, %s175
      %p179 = scmp.eq.s32.totalorder %s17, 0
      %p180 = por %p178, %p179
      %p181 = scmp.ne.s32.totalorder %s173, %s175
      %p182 = scmp.eq.s32.totalorder %s22, 3
      %p183 = por %p181, %p182
      %p184 = scmp.ne.s32.totalorder %s175, %s176
      %p185 = scmp.eq.s32.totalorder %s22, 0
      %p186 = por %p184, %p185
      %p187 = scmp.ne.s32.totalorder %s175, %s176
      %p188 = scmp.eq.s32.totalorder %s23, 3
      %p189 = por %p187, %p188
      %p191 = scmp.ne.s32.totalorder %s176, %s190
      %p192 = scmp.eq.s32.totalorder %s23, 0
      %p193 = por %p191, %p192
      %s195 = sadd.s32 %s194, 1
      %p198 = scmp.eq.s32.totalorder %s17, 3
      %p199 = scmp.ne.s32.totalorder %s194, %s196
      %p200 = scmp.eq.s32.totalorder %s17, 0
      %p201 = por %p199, %p200
      %p202 = scmp.ne.s32.totalorder %s194, %s196
      %p203 = scmp.eq.s32.totalorder %s22, 3
      %p204 = por %p202, %p203
      %p205 = scmp.ne.s32.totalorder %s196, %s197
      %p206 = scmp.eq.s32.totalorder %s22, 0
      %p207 = por %p205, %p206
      %p208 = scmp.ne.s32.totalorder %s196, %s197
      %p209 = scmp.eq.s32.totalorder %s23, 3
      %p210 = por %p208, %p209
      %p212 = scmp.ne.s32.totalorder %s197, %s211
      %p213 = scmp.eq.s32.totalorder %s23, 0
      %p214 = por %p212, %p213
      %s215 = ssub.s32 %s24, %s36
      %p216 = scmp.eq.s32.totalorder %s215, 0
      %s218 = sadd.s32 %s217, 1
      %s219 = scalar_select %p216, %s217, %s218
      %p222 = pneg %p216
      %p223 = scmp.eq.s32.totalorder %s17, 3
      %p224 = por %p222, %p223
      %p225 = scmp.ne.s32.totalorder %s217, %s220
      %p226 = scmp.eq.s32.totalorder %s17, 0
      %p227 = por %p225, %p226
      %p228 = scmp.ne.s32.totalorder %s217, %s220
      %p229 = scmp.eq.s32.totalorder %s22, 3
      %p230 = por %p228, %p229
      %p231 = scmp.ne.s32.totalorder %s220, %s221
      %p232 = scmp.eq.s32.totalorder %s22, 0
      %p233 = por %p231, %p232
      %p234 = scmp.ne.s32.totalorder %s220, %s221
      %p235 = scmp.eq.s32.totalorder %s23, 3
      %p236 = por %p234, %p235
      %p238 = scmp.ne.s32.totalorder %s221, %s237
      %p239 = scmp.eq.s32.totalorder %s23, 0
      %p240 = por %p238, %p239
      %p241 = scmp.le.s32.totalorder 1, %s17
      %p242 = scmp.lt.s32.totalorder %s17, 5
      %p243 = pnand %p241, %p242
      %p244 = pneg %p243
      // Predicated region
      $region9: #{tpu_custom_call.1} parent=5 // pred_check
        _
      $region10: #{tpu_custom_call.1} parent=5 // pred_check_branch
        %246 = sbr.rel (%p243) target = $region12
      $region11: #{tpu_custom_call.1} parent=5 // pred_region
        %s247 = ssub.s32 %s17, 1
        // Predicated region
        $region13: #{tpu_custom_call.1} parent=11 // pred_check
          %p248 = pneg %p76
        $region14: #{tpu_custom_call.1} parent=11 // pred_check_branch
          %250 = sbr.rel (%p248) target = $region16
        $region15: #{tpu_custom_call.1} parent=11 // pred_region
          _
        $region16: #{tpu_custom_call.1} parent=11 // pred_fallthru
          _
        // Predicated region
        $region17: #{tpu_custom_call.1} parent=11 // pred_check
          %p251 = pneg %p97
        $region18: #{tpu_custom_call.1} parent=11 // pred_check_branch
          %253 = sbr.rel (%p251) target = $region20
        $region19: #{tpu_custom_call.1} parent=11 // pred_region
          _
        $region20: #{tpu_custom_call.1} parent=11 // pred_fallthru
          _
        // Predicated region
        $region21: #{tpu_custom_call.1} parent=11 // pred_check
          %p254 = pneg %p118
        $region22: #{tpu_custom_call.1} parent=11 // pred_check_branch
          %256 = sbr.rel (%p254) target = $region24
        $region23: #{tpu_custom_call.1} parent=11 // pred_region
          _
        $region24: #{tpu_custom_call.1} parent=11 // pred_fallthru
          _
        // Predicated region
        $region25: #{tpu_custom_call.1} parent=11 // pred_check
          %p257 = pneg %p139
        $region26: #{tpu_custom_call.1} parent=11 // pred_check_branch
          %259 = sbr.rel (%p257) target = $region28
        $region27: #{tpu_custom_call.1} parent=11 // pred_region
          _
        $region28: #{tpu_custom_call.1} parent=11 // pred_fallthru
          _
        // Predicated region
        $region29: #{tpu_custom_call.1} parent=11 // pred_check
          %p260 = pneg %p186
        $region30: #{tpu_custom_call.1} parent=11 // pred_check_branch
          %262 = sbr.rel (%p260) target = $region32
        $region31: #{tpu_custom_call.1} parent=11 // pred_region
          _
        $region32: #{tpu_custom_call.1} parent=11 // pred_fallthru
          _
        // Predicated region
        $region33: #{tpu_custom_call.1} parent=11 // pred_check
          %p263 = pneg %p207
        $region34: #{tpu_custom_call.1} parent=11 // pred_check_branch
          %265 = sbr.rel (%p263) target = $region36
        $region35: #{tpu_custom_call.1} parent=11 // pred_region
          _
        $region36: #{tpu_custom_call.1} parent=11 // pred_fallthru
          _
      $region12: #{tpu_custom_call.1} parent=5 // pred_fallthru
        _
      %p266 = scmp.lt.s32.totalorder %s17, 4
      // Predicated region
      $region37: #{tpu_custom_call.1} parent=5 // pred_check
        %p267 = pneg %p266
      $region38: #{tpu_custom_call.1} parent=5 // pred_check_branch
        %269 = sbr.rel (%p267) target = $region40
      $region39: #{tpu_custom_call.1} parent=5 // pred_region
        // Predicated region
        $region41: #{tpu_custom_call.1} parent=39 // pred_check
          %p270 = pneg %p49
        $region42: #{tpu_custom_call.1} parent=39 // pred_check_branch
          %272 = sbr.rel (%p270) target = $region44
        $region43: #{tpu_custom_call.1} parent=39 // pred_region
          %p273 = scmp.lt.s32.totalorder %s24, 1
          %s274 = scalar_select %p273, %s24, 1
          %s275 = smul.addr %s274, 8
          %s276 = scalar_lea.vmem %s0, %s275
        $region44: #{tpu_custom_call.1} parent=39 // pred_fallthru
          _
        // Predicated region
        $region45: #{tpu_custom_call.1} parent=39 // pred_check
          %p277 = pneg %p159
        $region46: #{tpu_custom_call.1} parent=39 // pred_check_branch
          %279 = sbr.rel (%p277) target = $region48
        $region47: #{tpu_custom_call.1} parent=39 // pred_region
          %s280 = smul.u32 16, %s25
          %p281 = scmp.lt.s32.totalorder %s280, 31
          %s282 = scalar_select %p281, %s280, 31
          %s283 = smul.addr %s282, 8
          %s284 = scalar_lea.vmem %s5, %s283
          %s285 = smul.u32 16, %s25
        $region48: #{tpu_custom_call.1} parent=39 // pred_fallthru
          _
      $region40: #{tpu_custom_call.1} parent=5 // pred_fallthru
        _
      %p286 = scmp.le.s32.totalorder 1, %s17
      %p287 = scmp.lt.s32.totalorder %s17, 5
      %p288 = pnand %p286, %p287
      %p289 = pneg %p288
      // Predicated region
      $region49: #{tpu_custom_call.1} parent=5 // pred_check
        _
      $region50: #{tpu_custom_call.1} parent=5 // pred_check_branch
        %291 = sbr.rel (%p288) target = $region52
      $region51: #{tpu_custom_call.1} parent=5 // pred_region
        %s292 = ssub.s32 %s17, 1
        %p293 = scmp.lt.s32.totalorder %s26, 1
        %s294 = scalar_select %p293, %s26, 1
        %s295 = smul.addr %s294, 8
        %s296 = scalar_lea.vmem %s0, %s295
        %p297 = pneg %p55
        %p298 = pneg %p52
        %p299 = pneg %p76
        %p300 = pneg %p73
        %p301 = pneg %p97
        %p302 = pneg %p94
        %p303 = pneg %p118
        %p304 = pneg %p115
        %p305 = pneg %p139
        %p306 = pneg %p136
        %s307 = smul.u32 16, %s27
        %p308 = scmp.lt.s32.totalorder %s307, 31
        %s309 = scalar_select %p308, %s307, 31
        %s310 = smul.addr %s309, 8
        %s311 = scalar_lea.vmem %s5, %s310
        %p312 = pneg %p165
        %p313 = pneg %p162
        %p314 = pneg %p186
        %p315 = pneg %p183
        %p316 = pneg %p207
        %p317 = pneg %p204
        %p318 = pneg %p233
        %p319 = pneg %p230
        %s320 = sand.u32 %s220, 1
        %s321 = scalar_lea.sflag [#allocation9], %s320
        %s322 = sand.u32 %s220, 1
        %s323 = smul.addr %s322, 8
        %s324 = scalar_lea.vmem [#allocation8], %s323
        %p325 = scmp.lt.s32.totalorder %s26, 1
        %s326 = scalar_select %p325, %s26, 1
        %s327 = smul.addr %s326, 8
        %s328 = scalar_lea.vmem %s0, %s327
        %s329 = smul.u32 16, %s27
        %p330 = scmp.lt.s32.totalorder %s329, 31
        %s331 = scalar_select %p330, %s329, 31
        %s332 = smul.addr %s331, 8
        %s333 = scalar_lea.vmem %s5, %s332
        %s334 = smul.u32 16, %s27
        %p335 = scmp.eq.s32.totalorder %s27, 0
        // Predicated region
        $region53: #{tpu_custom_call.1} parent=51 // pred_check
          %p336 = pneg %p335
        $region54: #{tpu_custom_call.1} parent=51 // pred_check_branch
          %338 = sbr.rel (%p336) target = $region56
        $region55: #{tpu_custom_call.1} parent=51 // pred_region
          %v339 = vld [vmem:[%s328] sm:$0xff]
          %v340 = vld [vmem:[%s1] sm:$0xff]
          %v341 = vld [vmem:[%s1 + $0x8] sm:$0xff]
          %v342 = vld [vmem:[%s1 + $0x10] sm:$0xff]
          %v343 = vld [vmem:[%s1 + $0x18] sm:$0xff]
          %v344 = vld [vmem:[%s2] sm:$0x1]
          %v346 = vperm.slane %v344, 0
          %vm348 = vcmask 261120
          %v350 = vsel %vm348, %v339, 0
          %352 = vmatpush.msra.mxu0 0.0
          %353 = vmatpush.msra.mxu0 0.0
          %354 = vmatpush.msra.mxu0 0.0
          %355 = vmatpush.msra.mxu0 0.0
          %356 = vmatpush.msra.mxu0 0.0
          %357 = vmatpush.msra.mxu0 0.0
          %358 = vmatpush.msra.mxu0 0.0
          %359 = vmatpush.msra.mxu0 0.0
          %360 = vmatpush.msra.mxu0 0.0
          %361 = vmatpush.msra.mxu0 0.0
          %362 = vmatpush.msra.mxu0 0.0
          %363 = vmatpush.msra.mxu0 0.0
          %364 = vmatpush.msra.mxu0 %v343
          %365 = vmatpush.msra.mxu0 %v342
          %366 = vmatpush.msra.mxu0 %v341
          %367 = vmatpush.msra.mxu0 %v340
          %368 = vmatmul.f32.gmra.mxu0 %v350
          %v369 = vpop.f32.mrf.mxu0
          %v370 = vadd.f32 %v346, %v369
          %371 = vdwg.mxu0
          %v372 = vmax.f32 %v370, 0.0
          %v373 = vld [vmem:[%s3] sm:$0xff]
          %v374 = vld [vmem:[%s3 + $0x8] sm:$0xff]
          %v375 = vld [vmem:[%s3 + $0x10] sm:$0xff]
          %v376 = vld [vmem:[%s3 + $0x18] sm:$0xff]
          %v377 = vld [vmem:[%s4] sm:$0x1]
          %v379 = vperm.slane %v377, 0
          %v382 = vsel %vm348, %v372, 0
          %384 = vmatpush.msra.mxu0 0.0
          %385 = vmatpush.msra.mxu0 0.0
          %386 = vmatpush.msra.mxu0 0.0
          %387 = vmatpush.msra.mxu0 0.0
          %388 = vmatpush.msra.mxu0 0.0
          %389 = vmatpush.msra.mxu0 0.0
          %390 = vmatpush.msra.mxu0 0.0
          %391 = vmatpush.msra.mxu0 0.0
          %392 = vmatpush.msra.mxu0 0.0
          %393 = vmatpush.msra.mxu0 0.0
          %394 = vmatpush.msra.mxu0 0.0
          %395 = vmatpush.msra.mxu0 0.0
          %396 = vmatpush.msra.mxu0 %v376
          %397 = vmatpush.msra.mxu0 %v375
          %398 = vmatpush.msra.mxu0 %v374
          %399 = vmatpush.msra.mxu0 %v373
          %400 = vmatmul.f32.gmra.mxu0 %v382
          %v401 = vpop.f32.mrf.mxu0
          %v402 = vadd.f32 %v379, %v401
          %403 = vdwg.mxu0
          %vm404 = vcmask 130048
          %405 = vst.msk [vmem:[#allocation2] sm:$0xff] %vm404, %v402
          %s406 = scalar_lea.vmem %s3, 32
          %v407 = vld [vmem:[%s406] sm:$0xff]
          %v408 = vld [vmem:[%s406 + $0x8] sm:$0xff]
          %v409 = vld [vmem:[%s406 + $0x10] sm:$0xff]
          %v410 = vld [vmem:[%s406 + $0x18] sm:$0xff]
          %s411 = scalar_lea.vmem %s4, 1
          %v412 = vld [vmem:[%s411] sm:$0x1]
          %v414 = vperm.slane %v412, 0
          %416 = vrot.lane.b32.xlu0 %v372, 96
          %v417 = vpop.permute.xlu0 %416
          %v418 = vsel %vm348, %v417, 0
          %420 = vmatpush.msra.mxu0 0.0
          %421 = vmatpush.msra.mxu0 0.0
          %422 = vmatpush.msra.mxu0 0.0
          %423 = vmatpush.msra.mxu0 0.0
          %424 = vmatpush.msra.mxu0 0.0
          %425 = vmatpush.msra.mxu0 0.0
          %426 = vmatpush.msra.mxu0 0.0
          %427 = vmatpush.msra.mxu0 0.0
          %428 = vmatpush.msra.mxu0 0.0
          %429 = vmatpush.msra.mxu0 0.0
          %430 = vmatpush.msra.mxu0 0.0
          %431 = vmatpush.msra.mxu0 0.0
          %432 = vmatpush.msra.mxu0 %v410
          %433 = vmatpush.msra.mxu0 %v409
          %434 = vmatpush.msra.mxu0 %v408
          %435 = vmatpush.msra.mxu0 %v407
          %436 = vmatmul.f32.gmra.mxu0 %v418
          %v437 = vpop.f32.mrf.mxu0
          %v438 = vadd.f32 %v414, %v437
          %439 = vdwg.mxu0
          %s440 = scalar_lea.vmem [#allocation2], 8
          %441 = vst.msk [vmem:[%s440] sm:$0xff] %vm404, %v438
          %vm442 = vcmask 31744
          %443 = vst.msk [vmem:[#allocation3] sm:$0xff] %vm442, -inf
          %444 = vst.msk [vmem:[#allocation3 + $0x8] sm:$0xff] %vm442, -inf
          %445 = vst.msk [vmem:[#allocation4] sm:$0xff] %vm404, 0.0
          %446 = vst.msk [vmem:[#allocation4 + $0x8] sm:$0xff] %vm404, 0.0
          %447 = vst.msk [vmem:[#allocation5] sm:$0xff] %vm404, 0.0
          %448 = vst.msk [vmem:[#allocation5 + $0x8] sm:$0xff] %vm404, 0.0
          %449 = vst.msk [vmem:[#allocation6] sm:$0xff] %vm404, 0.0
          %450 = vst.msk [vmem:[#allocation6 + $0x8] sm:$0xff] %vm404, 0.0
          %451 = vst.msk [vmem:[#allocation7] sm:$0xff] %vm404, 0.0
          %452 = vst.msk [vmem:[#allocation7 + $0x8] sm:$0xff] %vm404, 0.0
        $region56: #{tpu_custom_call.1} parent=51 // pred_fallthru
          _
        %v453 = vld [vmem:[%s333] sm:$0xff]
        %v454 = vld [vmem:[%s333 + $0x8] sm:$0xff]
        %v455 = vld [vmem:[%s333 + $0x10] sm:$0xff]
        %v456 = vld [vmem:[%s333 + $0x18] sm:$0xff]
        %v457 = vld [vmem:[%s333 + $0x20] sm:$0xff]
        %v458 = vld [vmem:[%s333 + $0x28] sm:$0xff]
        %v459 = vld [vmem:[%s333 + $0x30] sm:$0xff]
        %v460 = vld [vmem:[%s333 + $0x38] sm:$0xff]
        %v461 = vld [vmem:[%s333 + $0x40] sm:$0xff]
        %v462 = vld [vmem:[%s333 + $0x48] sm:$0xff]
        %v463 = vld [vmem:[%s333 + $0x50] sm:$0xff]
        %v464 = vld [vmem:[%s333 + $0x58] sm:$0xff]
        %v465 = vld [vmem:[%s333 + $0x60] sm:$0xff]
        %v466 = vld [vmem:[%s333 + $0x68] sm:$0xff]
        %v467 = vld [vmem:[%s333 + $0x70] sm:$0xff]
        %v468 = vld [vmem:[%s333 + $0x78] sm:$0xff]
        %v469 = vld [vmem:[#allocation2] sm:$0xff]
        %v470 = vld [vmem:[#allocation2 + $0x8] sm:$0xff]
        %vm471 = vcmask 130048
        %v473 = vsel %vm471, %v469, 0
        %v476 = vsel %vm471, %v470, 0
        %v479 = vsel %vm471, %v453, 0
        %v482 = vsel %vm471, %v454, 0
        %v485 = vsel %vm471, %v455, 0
        %v488 = vsel %vm471, %v456, 0
        %v491 = vsel %vm471, %v457, 0
        %v494 = vsel %vm471, %v458, 0
        %v497 = vsel %vm471, %v459, 0
        %v500 = vsel %vm471, %v460, 0
        %v503 = vsel %vm471, %v461, 0
        %v506 = vsel %vm471, %v462, 0
        %v509 = vsel %vm471, %v463, 0
        %v512 = vsel %vm471, %v464, 0
        %v515 = vsel %vm471, %v465, 0
        %v518 = vsel %vm471, %v466, 0
        %v521 = vsel %vm471, %v467, 0
        %v524 = vsel %vm471, %v468, 0
        %526 = vmatpush.xpose.msra.mxu0 %v524
        %527 = vmatpush.xpose.msra.mxu0 %v521
        %528 = vmatpush.xpose.msra.mxu0 %v518
        %529 = vmatpush.xpose.msra.mxu0 %v515
        %530 = vmatpush.xpose.msra.mxu0 %v512
        %531 = vmatpush.xpose.msra.mxu0 %v509
        %532 = vmatpush.xpose.msra.mxu0 %v506
        %533 = vmatpush.xpose.msra.mxu0 %v503
        %534 = vmatpush.xpose.msra.mxu0 %v500
        %535 = vmatpush.xpose.msra.mxu0 %v497
        %536 = vmatpush.xpose.msra.mxu0 %v494
        %537 = vmatpush.xpose.msra.mxu0 %v491
        %538 = vmatpush.xpose.msra.mxu0 %v488
        %539 = vmatpush.xpose.msra.mxu0 %v485
        %540 = vmatpush.xpose.msra.mxu0 %v482
        %541 = vmatpush.xpose.msra.mxu0 %v479
        %542 = vmatmul.f32.gmra.mxu0 %v473
        %v543 = vpop.f32.mrf.mxu0
        %v544 = vadd.f32 0.0, %v543
        %545 = vmatmul.f32.gmra.mxu0 %v476
        %v546 = vpop.f32.mrf.mxu0
        %v547 = vadd.f32 0.0, %v546
        %548 = vdwg.mxu0
        %v549 = vlaneseq
        %v550 = vand.u32 %v549, 127
        %s551 = smul.u32 %s27, 128
        %v552 = vstv %s551
        %v553 = vadd.s32 %v550, %v552
        %vm554 = vcmp.lt.s32.totalorder %v553, 200
        %v555 = vsel %vm554, 1, 0
        %vm556 = vcmp.eq.s32.totalorder %v555, 1
        %v557 = vsel %vm556, %v544, -inf
        %v558 = vsel %vm556, %v547, -inf
        %559 = vmax.xlane.f32.xlu0 %v557
        %v560 = vpop.xlane.xlu0 %559
        %561 = vmax.xlane.f32.xlu0 %v558
        %v562 = vpop.xlane.xlu0 %561
        %vm563 = vcmp.eq.f32.partialorder %v557, %v560
        %vm564 = vcmp.eq.f32.partialorder %v558, %v562
        %v565 = vsel %vm563, 1, 0
        %v566 = vsel %vm564, 1, 0
        %v567 = vcvt.s32.f32 %v565
        %v568 = vcvt.s32.f32 %v566
        %569 = vmatpush.msra.mxu0 %v468
        %570 = vmatpush.msra.mxu0 %v467
        %571 = vmatpush.msra.mxu0 %v466
        %572 = vmatpush.msra.mxu0 %v465
        %573 = vmatpush.msra.mxu0 %v464
        %574 = vmatpush.msra.mxu0 %v463
        %575 = vmatpush.msra.mxu0 %v462
        %576 = vmatpush.msra.mxu0 %v461
        %577 = vmatpush.msra.mxu0 %v460
        %578 = vmatpush.msra.mxu0 %v459
        %579 = vmatpush.msra.mxu0 %v458
        %580 = vmatpush.msra.mxu0 %v457
        %581 = vmatpush.msra.mxu0 %v456
        %582 = vmatpush.msra.mxu0 %v455
        %583 = vmatpush.msra.mxu0 %v454
        %584 = vmatpush.msra.mxu0 %v453
        %585 = vmatmul.f32.gmra.mxu0 %v567
        %v586 = vpop.f32.mrf.mxu0
        %v587 = vadd.f32 0.0, %v586
        %588 = vmatmul.f32.gmra.mxu0 %v568
        %v589 = vpop.f32.mrf.mxu0
        %v590 = vadd.f32 0.0, %v589
        %591 = vdwg.mxu0
        %v592 = vsel %vm563, -inf, %v557
        %v593 = vsel %vm564, -inf, %v558
        %594 = vmax.xlane.f32.xlu0 %v592
        %v595 = vpop.xlane.xlu0 %594
        %596 = vmax.xlane.f32.xlu0 %v593
        %v597 = vpop.xlane.xlu0 %596
        %vm598 = vcmp.eq.f32.partialorder %v592, %v595
        %vm599 = vcmp.eq.f32.partialorder %v593, %v597
        %v600 = vsel %vm598, 1, 0
        %v601 = vsel %vm599, 1, 0
        %v602 = vcvt.s32.f32 %v600
        %v603 = vcvt.s32.f32 %v601
        %604 = vmatpush.msra.mxu0 %v468
        %605 = vmatpush.msra.mxu0 %v467
        %606 = vmatpush.msra.mxu0 %v466
        %607 = vmatpush.msra.mxu0 %v465
        %608 = vmatpush.msra.mxu0 %v464
        %609 = vmatpush.msra.mxu0 %v463
        %610 = vmatpush.msra.mxu0 %v462
        %611 = vmatpush.msra.mxu0 %v461
        %612 = vmatpush.msra.mxu0 %v460
        %613 = vmatpush.msra.mxu0 %v459
        %614 = vmatpush.msra.mxu0 %v458
        %615 = vmatpush.msra.mxu0 %v457
        %616 = vmatpush.msra.mxu0 %v456
        %617 = vmatpush.msra.mxu0 %v455
        %618 = vmatpush.msra.mxu0 %v454
        %619 = vmatpush.msra.mxu0 %v453
        %620 = vmatmul.f32.gmra.mxu0 %v602
        %v621 = vpop.f32.mrf.mxu0
        %v622 = vadd.f32 0.0, %v621
        %623 = vmatmul.f32.gmra.mxu0 %v603
        %v624 = vpop.f32.mrf.mxu0
        %v625 = vadd.f32 0.0, %v624
        %626 = vdwg.mxu0
        %v627 = vsel %vm598, -inf, %v592
        %v628 = vsel %vm599, -inf, %v593
        %629 = vmax.xlane.f32.xlu0 %v627
        %v630 = vpop.xlane.xlu0 %629
        %631 = vmax.xlane.f32.xlu0 %v628
        %v632 = vpop.xlane.xlu0 %631
        %vm633 = vcmp.eq.f32.partialorder %v627, %v630
        %vm634 = vcmp.eq.f32.partialorder %v628, %v632
        %v635 = vsel %vm633, 1, 0
        %v636 = vsel %vm634, 1, 0
        %v637 = vcvt.s32.f32 %v635
        %v638 = vcvt.s32.f32 %v636
        %639 = vmatpush.msra.mxu0 %v468
        %640 = vmatpush.msra.mxu0 %v467
        %641 = vmatpush.msra.mxu0 %v466
        %642 = vmatpush.msra.mxu0 %v465
        %643 = vmatpush.msra.mxu0 %v464
        %644 = vmatpush.msra.mxu0 %v463
        %645 = vmatpush.msra.mxu0 %v462
        %646 = vmatpush.msra.mxu0 %v461
        %647 = vmatpush.msra.mxu0 %v460
        %648 = vmatpush.msra.mxu0 %v459
        %649 = vmatpush.msra.mxu0 %v458
        %650 = vmatpush.msra.mxu0 %v457
        %651 = vmatpush.msra.mxu0 %v456
        %652 = vmatpush.msra.mxu0 %v455
        %653 = vmatpush.msra.mxu0 %v454
        %654 = vmatpush.msra.mxu0 %v453
        %655 = vmatmul.f32.gmra.mxu0 %v637
        %v656 = vpop.f32.mrf.mxu0
        %v657 = vadd.f32 0.0, %v656
        %658 = vmatmul.f32.gmra.mxu0 %v638
        %v659 = vpop.f32.mrf.mxu0
        %v660 = vadd.f32 0.0, %v659
        %661 = vdwg.mxu0
        %v662 = vsel %vm633, -inf, %v627
        %v663 = vsel %vm634, -inf, %v628
        %664 = vmax.xlane.f32.xlu0 %v662
        %v665 = vpop.xlane.xlu0 %664
        %666 = vmax.xlane.f32.xlu0 %v663
        %v667 = vpop.xlane.xlu0 %666
        %vm668 = vcmp.eq.f32.partialorder %v662, %v665
        %vm669 = vcmp.eq.f32.partialorder %v663, %v667
        %v670 = vsel %vm668, 1, 0
        %v671 = vsel %vm669, 1, 0
        %v672 = vcvt.s32.f32 %v670
        %v673 = vcvt.s32.f32 %v671
        %674 = vmatpush.msra.mxu0 %v468
        %675 = vmatpush.msra.mxu0 %v467
        %676 = vmatpush.msra.mxu0 %v466
        %677 = vmatpush.msra.mxu0 %v465
        %678 = vmatpush.msra.mxu0 %v464
        %679 = vmatpush.msra.mxu0 %v463
        %680 = vmatpush.msra.mxu0 %v462
        %681 = vmatpush.msra.mxu0 %v461
        %682 = vmatpush.msra.mxu0 %v460
        %683 = vmatpush.msra.mxu0 %v459
        %684 = vmatpush.msra.mxu0 %v458
        %685 = vmatpush.msra.mxu0 %v457
        %686 = vmatpush.msra.mxu0 %v456
        %687 = vmatpush.msra.mxu0 %v455
        %688 = vmatpush.msra.mxu0 %v454
        %689 = vmatpush.msra.mxu0 %v453
        %690 = vmatmul.f32.gmra.mxu0 %v672
        %v691 = vpop.f32.mrf.mxu0
        %v692 = vadd.f32 0.0, %v691
        %693 = vmatmul.f32.gmra.mxu0 %v673
        %v694 = vpop.f32.mrf.mxu0
        %v695 = vadd.f32 0.0, %v694
        %696 = vdwg.mxu0
        %v697 = vld [vmem:[#allocation3] sm:$0xff]
        %v698 = vld [vmem:[#allocation3 + $0x8] sm:$0xff]
        %v699 = vld [vmem:[#allocation4] sm:$0xff]
        %v700 = vld [vmem:[#allocation4 + $0x8] sm:$0xff]
        %v701 = vld [vmem:[#allocation5] sm:$0xff]
        %v702 = vld [vmem:[#allocation5 + $0x8] sm:$0xff]
        %v703 = vld [vmem:[#allocation6] sm:$0xff]
        %v704 = vld [vmem:[#allocation6 + $0x8] sm:$0xff]
        %v705 = vld [vmem:[#allocation7] sm:$0xff]
        %v706 = vld [vmem:[#allocation7 + $0x8] sm:$0xff]
        %709 = vrot.lane.b32.xlu0 %v697, 127
        %v710 = vpop.permute.xlu0 %709
        %711 = vrot.lane.b32.xlu0 %v698, 127
        %v712 = vpop.permute.xlu0 %711
        %v715 = vmax.f32 %v697, %v710
        %v716 = vmax.f32 %v698, %v712
        %717 = vrot.lane.b32.xlu0 %v697, 126
        %v718 = vpop.permute.xlu0 %717
        %719 = vrot.lane.b32.xlu0 %v698, 126
        %v720 = vpop.permute.xlu0 %719
        %v723 = vmax.f32 %v715, %v718
        %v724 = vmax.f32 %v716, %v720
        %725 = vrot.lane.b32.xlu0 %v697, 125
        %v726 = vpop.permute.xlu0 %725
        %727 = vrot.lane.b32.xlu0 %v698, 125
        %v728 = vpop.permute.xlu0 %727
        %v731 = vmax.f32 %v723, %v726
        %v732 = vmax.f32 %v724, %v728
        %v733 = vmax.f32 %v731, %v560
        %v734 = vmax.f32 %v732, %v562
        %v735 = vmax.f32 %v733, %v595
        %v736 = vmax.f32 %v734, %v597
        %v737 = vmax.f32 %v735, %v630
        %v738 = vmax.f32 %v736, %v632
        %v739 = vmax.f32 %v737, %v665
        %v740 = vmax.f32 %v738, %v667
        %vm741 = vcmp.eq.f32.partialorder %v697, %v739
        %vm742 = vcmp.eq.f32.partialorder %v698, %v740
        %v743 = vsel %vm741, 1, 0
        %v744 = vsel %vm742, 1, 0
        %745 = vset.pattern.permute.xlu0 0
        %746 = vperm.xlu0 %745, %v743
        %v747 = vpop.permute.xlu0 %746
        %748 = vset.pattern.permute.xlu0 0
        %749 = vperm.xlu0 %748, %v744
        %v750 = vpop.permute.xlu0 %749
        %vm751 = vcmp.eq.s32.totalorder %v747, 1
        %vm752 = vcmp.eq.s32.totalorder %v750, 1
        %v753 = vsel %vm751, %v699, 0.0
        %v754 = vsel %vm752, %v700, 0.0
        %v755 = vadd.f32 %v753, 0.0
        %v756 = vadd.f32 %v754, 0.0
        %v757 = vsel %vm741, -inf, %v697
        %v758 = vsel %vm742, -inf, %v698
        %761 = vrot.lane.b32.xlu0 %v739, 1
        %v762 = vpop.permute.xlu0 %761
        %763 = vrot.lane.b32.xlu0 %v740, 1
        %v764 = vpop.permute.xlu0 %763
        %vm767 = vcmp.eq.f32.partialorder %v697, %v762
        %vm768 = vcmp.eq.f32.partialorder %v698, %v764
        %v769 = vsel %vm767, 1, 0
        %v770 = vsel %vm768, 1, 0
        %771 = vset.pattern.permute.xlu0 1
        %772 = vperm.xlu0 %771, %v769
        %v773 = vpop.permute.xlu0 %772
        %774 = vset.pattern.permute.xlu0 1
        %775 = vperm.xlu0 %774, %v770
        %v776 = vpop.permute.xlu0 %775
        %vm777 = vcmp.eq.s32.totalorder %v773, 1
        %vm778 = vcmp.eq.s32.totalorder %v776, 1
        %v779 = vsel %vm777, %v701, 0.0
        %v780 = vsel %vm778, %v702, 0.0
        %v781 = vadd.f32 %v755, %v779
        %v782 = vadd.f32 %v756, %v780
        %v783 = vsel %vm767, -inf, %v697
        %v784 = vsel %vm768, -inf, %v698
        %785 = vrot.lane.b32.xlu0 %v739, 2
        %v786 = vpop.permute.xlu0 %785
        %787 = vrot.lane.b32.xlu0 %v740, 2
        %v788 = vpop.permute.xlu0 %787
        %vm791 = vcmp.eq.f32.partialorder %v697, %v786
        %vm792 = vcmp.eq.f32.partialorder %v698, %v788
        %v793 = vsel %vm791, 1, 0
        %v794 = vsel %vm792, 1, 0
        %795 = vset.pattern.permute.xlu0 2
        %796 = vperm.xlu0 %795, %v793
        %v797 = vpop.permute.xlu0 %796
        %798 = vset.pattern.permute.xlu0 2
        %799 = vperm.xlu0 %798, %v794
        %v800 = vpop.permute.xlu0 %799
        %vm801 = vcmp.eq.s32.totalorder %v797, 1
        %vm802 = vcmp.eq.s32.totalorder %v800, 1
        %v803 = vsel %vm801, %v703, 0.0
        %v804 = vsel %vm802, %v704, 0.0
        %v805 = vadd.f32 %v781, %v803
        %v806 = vadd.f32 %v782, %v804
        %v807 = vsel %vm791, -inf, %v697
        %v808 = vsel %vm792, -inf, %v698
        %809 = vrot.lane.b32.xlu0 %v739, 3
        %v810 = vpop.permute.xlu0 %809
        %811 = vrot.lane.b32.xlu0 %v740, 3
        %v812 = vpop.permute.xlu0 %811
        %vm815 = vcmp.eq.f32.partialorder %v697, %v810
        %vm816 = vcmp.eq.f32.partialorder %v698, %v812
        %v817 = vsel %vm815, 1, 0
        %v818 = vsel %vm816, 1, 0
        %819 = vset.pattern.permute.xlu0 3
        %820 = vperm.xlu0 %819, %v817
        %v821 = vpop.permute.xlu0 %820
        %822 = vset.pattern.permute.xlu0 3
        %823 = vperm.xlu0 %822, %v818
        %v824 = vpop.permute.xlu0 %823
        %vm825 = vcmp.eq.s32.totalorder %v821, 1
        %vm826 = vcmp.eq.s32.totalorder %v824, 1
        %v827 = vsel %vm825, %v705, 0.0
        %v828 = vsel %vm826, %v706, 0.0
        %v829 = vadd.f32 %v805, %v827
        %v830 = vadd.f32 %v806, %v828
        %v831 = vsel %vm815, -inf, %v697
        %v832 = vsel %vm816, -inf, %v698
        %vm833 = vcmp.eq.f32.partialorder %v560, %v739
        %vm834 = vcmp.eq.f32.partialorder %v562, %v740
        %v835 = vsel %vm833, 1, 0
        %v836 = vsel %vm834, 1, 0
        %837 = vset.pattern.permute.xlu0 0
        %838 = vperm.xlu0 %837, %v835
        %v839 = vpop.permute.xlu0 %838
        %840 = vset.pattern.permute.xlu0 0
        %841 = vperm.xlu0 %840, %v836
        %v842 = vpop.permute.xlu0 %841
        %vm843 = vcmp.eq.s32.totalorder %v839, 1
        %vm844 = vcmp.eq.s32.totalorder %v842, 1
        %v845 = vsel %vm843, %v587, 0.0
        %v846 = vsel %vm844, %v590, 0.0
        %v847 = vadd.f32 %v829, %v845
        %v848 = vadd.f32 %v830, %v846
        %v849 = vsel %vm833, -inf, %v560
        %v850 = vsel %vm834, -inf, %v562
        %vm851 = vcmp.eq.f32.partialorder %v595, %v739
        %vm852 = vcmp.eq.f32.partialorder %v597, %v740
        %v853 = vsel %vm851, 1, 0
        %v854 = vsel %vm852, 1, 0
        %855 = vset.pattern.permute.xlu0 0
        %856 = vperm.xlu0 %855, %v853
        %v857 = vpop.permute.xlu0 %856
        %858 = vset.pattern.permute.xlu0 0
        %859 = vperm.xlu0 %858, %v854
        %v860 = vpop.permute.xlu0 %859
        %vm861 = vcmp.eq.s32.totalorder %v857, 1
        %vm862 = vcmp.eq.s32.totalorder %v860, 1
        %v863 = vsel %vm861, %v622, 0.0
        %v864 = vsel %vm862, %v625, 0.0
        %v865 = vadd.f32 %v847, %v863
        %v866 = vadd.f32 %v848, %v864
        %v867 = vsel %vm851, -inf, %v595
        %v868 = vsel %vm852, -inf, %v597
        %vm869 = vcmp.eq.f32.partialorder %v630, %v739
        %vm870 = vcmp.eq.f32.partialorder %v632, %v740
        %v871 = vsel %vm869, 1, 0
        %v872 = vsel %vm870, 1, 0
        %873 = vset.pattern.permute.xlu0 0
        %874 = vperm.xlu0 %873, %v871
        %v875 = vpop.permute.xlu0 %874
        %876 = vset.pattern.permute.xlu0 0
        %877 = vperm.xlu0 %876, %v872
        %v878 = vpop.permute.xlu0 %877
        %vm879 = vcmp.eq.s32.totalorder %v875, 1
        %vm880 = vcmp.eq.s32.totalorder %v878, 1
        %v881 = vsel %vm879, %v657, 0.0
        %v882 = vsel %vm880, %v660, 0.0
        %v883 = vadd.f32 %v865, %v881
        %v884 = vadd.f32 %v866, %v882
        %v885 = vsel %vm869, -inf, %v630
        %v886 = vsel %vm870, -inf, %v632
        %vm887 = vcmp.eq.f32.partialorder %v665, %v739
        %vm888 = vcmp.eq.f32.partialorder %v667, %v740
        %v889 = vsel %vm887, 1, 0
        %v890 = vsel %vm888, 1, 0
        %891 = vset.pattern.permute.xlu0 0
        %892 = vperm.xlu0 %891, %v889
        %v893 = vpop.permute.xlu0 %892
        %894 = vset.pattern.permute.xlu0 0
        %895 = vperm.xlu0 %894, %v890
        %v896 = vpop.permute.xlu0 %895
        %vm897 = vcmp.eq.s32.totalorder %v893, 1
        %vm898 = vcmp.eq.s32.totalorder %v896, 1
        %v899 = vsel %vm897, %v692, 0.0
        %v900 = vsel %vm898, %v695, 0.0
        %v901 = vadd.f32 %v883, %v899
        %v902 = vadd.f32 %v884, %v900
        %v903 = vsel %vm887, -inf, %v665
        %v904 = vsel %vm888, -inf, %v667
        %907 = vrot.lane.b32.xlu0 %v783, 127
        %v908 = vpop.permute.xlu0 %907
        %909 = vrot.lane.b32.xlu0 %v784, 127
        %v910 = vpop.permute.xlu0 %909
        %v913 = vmax.f32 %v757, %v908
        %v914 = vmax.f32 %v758, %v910
        %917 = vrot.lane.b32.xlu0 %v807, 126
        %v918 = vpop.permute.xlu0 %917
        %919 = vrot.lane.b32.xlu0 %v808, 126
        %v920 = vpop.permute.xlu0 %919
        %v923 = vmax.f32 %v913, %v918
        %v924 = vmax.f32 %v914, %v920
        %927 = vrot.lane.b32.xlu0 %v831, 125
        %v928 = vpop.permute.xlu0 %927
        %929 = vrot.lane.b32.xlu0 %v832, 125
        %v930 = vpop.permute.xlu0 %929
        %v933 = vmax.f32 %v923, %v928
        %v934 = vmax.f32 %v924, %v930
        %v935 = vmax.f32 %v933, %v849
        %v936 = vmax.f32 %v934, %v850
        %v937 = vmax.f32 %v935, %v867
        %v938 = vmax.f32 %v936, %v868
        %v939 = vmax.f32 %v937, %v885
        %v940 = vmax.f32 %v938, %v886
        %v941 = vmax.f32 %v939, %v903
        %v942 = vmax.f32 %v940, %v904
        %vm943 = vcmp.eq.f32.partialorder %v757, %v941
        %vm944 = vcmp.eq.f32.partialorder %v758, %v942
        %v945 = vsel %vm943, 1, 0
        %v946 = vsel %vm944, 1, 0
        %947 = vset.pattern.permute.xlu0 0
        %948 = vperm.xlu0 %947, %v945
        %v949 = vpop.permute.xlu0 %948
        %950 = vset.pattern.permute.xlu0 0
        %951 = vperm.xlu0 %950, %v946
        %v952 = vpop.permute.xlu0 %951
        %vm953 = vcmp.eq.s32.totalorder %v949, 1
        %vm954 = vcmp.eq.s32.totalorder %v952, 1
        %v955 = vsel %vm953, %v699, 0.0
        %v956 = vsel %vm954, %v700, 0.0
        %v957 = vadd.f32 %v955, 0.0
        %v958 = vadd.f32 %v956, 0.0
        %v959 = vsel %vm943, -inf, %v757
        %v960 = vsel %vm944, -inf, %v758
        %963 = vrot.lane.b32.xlu0 %v941, 1
        %v964 = vpop.permute.xlu0 %963
        %965 = vrot.lane.b32.xlu0 %v942, 1
        %v966 = vpop.permute.xlu0 %965
        %vm969 = vcmp.eq.f32.partialorder %v783, %v964
        %vm970 = vcmp.eq.f32.partialorder %v784, %v966
        %v971 = vsel %vm969, 1, 0
        %v972 = vsel %vm970, 1, 0
        %973 = vset.pattern.permute.xlu0 1
        %974 = vperm.xlu0 %973, %v971
        %v975 = vpop.permute.xlu0 %974
        %976 = vset.pattern.permute.xlu0 1
        %977 = vperm.xlu0 %976, %v972
        %v978 = vpop.permute.xlu0 %977
        %vm979 = vcmp.eq.s32.totalorder %v975, 1
        %vm980 = vcmp.eq.s32.totalorder %v978, 1
        %v981 = vsel %vm979, %v701, 0.0
        %v982 = vsel %vm980, %v702, 0.0
        %v983 = vadd.f32 %v957, %v981
        %v984 = vadd.f32 %v958, %v982
        %v985 = vsel %vm969, -inf, %v783
        %v986 = vsel %vm970, -inf, %v784
        %987 = vrot.lane.b32.xlu0 %v941, 2
        %v988 = vpop.permute.xlu0 %987
        %989 = vrot.lane.b32.xlu0 %v942, 2
        %v990 = vpop.permute.xlu0 %989
        %vm993 = vcmp.eq.f32.partialorder %v807, %v988
        %vm994 = vcmp.eq.f32.partialorder %v808, %v990
        %v995 = vsel %vm993, 1, 0
        %v996 = vsel %vm994, 1, 0
        %997 = vset.pattern.permute.xlu0 2
        %998 = vperm.xlu0 %997, %v995
        %v999 = vpop.permute.xlu0 %998
        %1000 = vset.pattern.permute.xlu0 2
        %1001 = vperm.xlu0 %1000, %v996
        %v1002 = vpop.permute.xlu0 %1001
        %vm1003 = vcmp.eq.s32.totalorder %v999, 1
        %vm1004 = vcmp.eq.s32.totalorder %v1002, 1
        %v1005 = vsel %vm1003, %v703, 0.0
        %v1006 = vsel %vm1004, %v704, 0.0
        %v1007 = vadd.f32 %v983, %v1005
        %v1008 = vadd.f32 %v984, %v1006
        %v1009 = vsel %vm993, -inf, %v807
        %v1010 = vsel %vm994, -inf, %v808
        %1011 = vrot.lane.b32.xlu0 %v941, 3
        %v1012 = vpop.permute.xlu0 %1011
        %1013 = vrot.lane.b32.xlu0 %v942, 3
        %v1014 = vpop.permute.xlu0 %1013
        %vm1017 = vcmp.eq.f32.partialorder %v831, %v1012
        %vm1018 = vcmp.eq.f32.partialorder %v832, %v1014
        %v1019 = vsel %vm1017, 1, 0
        %v1020 = vsel %vm1018, 1, 0
        %1021 = vset.pattern.permute.xlu0 3
        %1022 = vperm.xlu0 %1021, %v1019
        %v1023 = vpop.permute.xlu0 %1022
        %1024 = vset.pattern.permute.xlu0 3
        %1025 = vperm.xlu0 %1024, %v1020
        %v1026 = vpop.permute.xlu0 %1025
        %vm1027 = vcmp.eq.s32.totalorder %v1023, 1
        %vm1028 = vcmp.eq.s32.totalorder %v1026, 1
        %v1029 = vsel %vm1027, %v705, 0.0
        %v1030 = vsel %vm1028, %v706, 0.0
        %v1031 = vadd.f32 %v1007, %v1029
        %v1032 = vadd.f32 %v1008, %v1030
        %v1033 = vsel %vm1017, -inf, %v831
        %v1034 = vsel %vm1018, -inf, %v832
        %vm1035 = vcmp.eq.f32.partialorder %v849, %v941
        %vm1036 = vcmp.eq.f32.partialorder %v850, %v942
        %v1037 = vsel %vm1035, 1, 0
        %v1038 = vsel %vm1036, 1, 0
        %1039 = vset.pattern.permute.xlu0 0
        %1040 = vperm.xlu0 %1039, %v1037
        %v1041 = vpop.permute.xlu0 %1040
        %1042 = vset.pattern.permute.xlu0 0
        %1043 = vperm.xlu0 %1042, %v1038
        %v1044 = vpop.permute.xlu0 %1043
        %vm1045 = vcmp.eq.s32.totalorder %v1041, 1
        %vm1046 = vcmp.eq.s32.totalorder %v1044, 1
        %v1047 = vsel %vm1045, %v587, 0.0
        %v1048 = vsel %vm1046, %v590, 0.0
        %v1049 = vadd.f32 %v1031, %v1047
        %v1050 = vadd.f32 %v1032, %v1048
        %v1051 = vsel %vm1035, -inf, %v849
        %v1052 = vsel %vm1036, -inf, %v850
        %vm1053 = vcmp.eq.f32.partialorder %v867, %v941
        %vm1054 = vcmp.eq.f32.partialorder %v868, %v942
        %v1055 = vsel %vm1053, 1, 0
        %v1056 = vsel %vm1054, 1, 0
        %1057 = vset.pattern.permute.xlu0 0
        %1058 = vperm.xlu0 %1057, %v1055
        %v1059 = vpop.permute.xlu0 %1058
        %1060 = vset.pattern.permute.xlu0 0
        %1061 = vperm.xlu0 %1060, %v1056
        %v1062 = vpop.permute.xlu0 %1061
        %vm1063 = vcmp.eq.s32.totalorder %v1059, 1
        %vm1064 = vcmp.eq.s32.totalorder %v1062, 1
        %v1065 = vsel %vm1063, %v622, 0.0
        %v1066 = vsel %vm1064, %v625, 0.0
        %v1067 = vadd.f32 %v1049, %v1065
        %v1068 = vadd.f32 %v1050, %v1066
        %v1069 = vsel %vm1053, -inf, %v867
        %v1070 = vsel %vm1054, -inf, %v868
        %vm1071 = vcmp.eq.f32.partialorder %v885, %v941
        %vm1072 = vcmp.eq.f32.partialorder %v886, %v942
        %v1073 = vsel %vm1071, 1, 0
        %v1074 = vsel %vm1072, 1, 0
        %1075 = vset.pattern.permute.xlu0 0
        %1076 = vperm.xlu0 %1075, %v1073
        %v1077 = vpop.permute.xlu0 %1076
        %1078 = vset.pattern.permute.xlu0 0
        %1079 = vperm.xlu0 %1078, %v1074
        %v1080 = vpop.permute.xlu0 %1079
        %vm1081 = vcmp.eq.s32.totalorder %v1077, 1
        %vm1082 = vcmp.eq.s32.totalorder %v1080, 1
        %v1083 = vsel %vm1081, %v657, 0.0
        %v1084 = vsel %vm1082, %v660, 0.0
        %v1085 = vadd.f32 %v1067, %v1083
        %v1086 = vadd.f32 %v1068, %v1084
        %v1087 = vsel %vm1071, -inf, %v885
        %v1088 = vsel %vm1072, -inf, %v886
        %vm1089 = vcmp.eq.f32.partialorder %v903, %v941
        %vm1090 = vcmp.eq.f32.partialorder %v904, %v942
        %v1091 = vsel %vm1089, 1, 0
        %v1092 = vsel %vm1090, 1, 0
        %1093 = vset.pattern.permute.xlu0 0
        %1094 = vperm.xlu0 %1093, %v1091
        %v1095 = vpop.permute.xlu0 %1094
        %1096 = vset.pattern.permute.xlu0 0
        %1097 = vperm.xlu0 %1096, %v1092
        %v1098 = vpop.permute.xlu0 %1097
        %vm1099 = vcmp.eq.s32.totalorder %v1095, 1
        %vm1100 = vcmp.eq.s32.totalorder %v1098, 1
        %v1101 = vsel %vm1099, %v692, 0.0
        %v1102 = vsel %vm1100, %v695, 0.0
        %v1103 = vadd.f32 %v1085, %v1101
        %v1104 = vadd.f32 %v1086, %v1102
        %v1105 = vsel %vm1089, -inf, %v903
        %v1106 = vsel %vm1090, -inf, %v904
        %1109 = vrot.lane.b32.xlu0 %v985, 127
        %v1110 = vpop.permute.xlu0 %1109
        %1111 = vrot.lane.b32.xlu0 %v986, 127
        %v1112 = vpop.permute.xlu0 %1111
        %v1115 = vmax.f32 %v959, %v1110
        %v1116 = vmax.f32 %v960, %v1112
        %1119 = vrot.lane.b32.xlu0 %v1009, 126
        %v1120 = vpop.permute.xlu0 %1119
        %1121 = vrot.lane.b32.xlu0 %v1010, 126
        %v1122 = vpop.permute.xlu0 %1121
        %v1125 = vmax.f32 %v1115, %v1120
        %v1126 = vmax.f32 %v1116, %v1122
        %1129 = vrot.lane.b32.xlu0 %v1033, 125
        %v1130 = vpop.permute.xlu0 %1129
        %1131 = vrot.lane.b32.xlu0 %v1034, 125
        %v1132 = vpop.permute.xlu0 %1131
        %v1135 = vmax.f32 %v1125, %v1130
        %v1136 = vmax.f32 %v1126, %v1132
        %v1137 = vmax.f32 %v1135, %v1051
        %v1138 = vmax.f32 %v1136, %v1052
        %v1139 = vmax.f32 %v1137, %v1069
        %v1140 = vmax.f32 %v1138, %v1070
        %v1141 = vmax.f32 %v1139, %v1087
        %v1142 = vmax.f32 %v1140, %v1088
        %v1143 = vmax.f32 %v1141, %v1105
        %v1144 = vmax.f32 %v1142, %v1106
        %vm1145 = vcmp.eq.f32.partialorder %v959, %v1143
        %vm1146 = vcmp.eq.f32.partialorder %v960, %v1144
        %v1147 = vsel %vm1145, 1, 0
        %v1148 = vsel %vm1146, 1, 0
        %1149 = vset.pattern.permute.xlu0 0
        %1150 = vperm.xlu0 %1149, %v1147
        %v1151 = vpop.permute.xlu0 %1150
        %1152 = vset.pattern.permute.xlu0 0
        %1153 = vperm.xlu0 %1152, %v1148
        %v1154 = vpop.permute.xlu0 %1153
        %vm1155 = vcmp.eq.s32.totalorder %v1151, 1
        %vm1156 = vcmp.eq.s32.totalorder %v1154, 1
        %v1157 = vsel %vm1155, %v699, 0.0
        %v1158 = vsel %vm1156, %v700, 0.0
        %v1159 = vadd.f32 %v1157, 0.0
        %v1160 = vadd.f32 %v1158, 0.0
        %v1161 = vsel %vm1145, -inf, %v959
        %v1162 = vsel %vm1146, -inf, %v960
        %1165 = vrot.lane.b32.xlu0 %v1143, 1
        %v1166 = vpop.permute.xlu0 %1165
        %1167 = vrot.lane.b32.xlu0 %v1144, 1
        %v1168 = vpop.permute.xlu0 %1167
        %vm1171 = vcmp.eq.f32.partialorder %v985, %v1166
        %vm1172 = vcmp.eq.f32.partialorder %v986, %v1168
        %v1173 = vsel %vm1171, 1, 0
        %v1174 = vsel %vm1172, 1, 0
        %1175 = vset.pattern.permute.xlu0 1
        %1176 = vperm.xlu0 %1175, %v1173
        %v1177 = vpop.permute.xlu0 %1176
        %1178 = vset.pattern.permute.xlu0 1
        %1179 = vperm.xlu0 %1178, %v1174
        %v1180 = vpop.permute.xlu0 %1179
        %vm1181 = vcmp.eq.s32.totalorder %v1177, 1
        %vm1182 = vcmp.eq.s32.totalorder %v1180, 1
        %v1183 = vsel %vm1181, %v701, 0.0
        %v1184 = vsel %vm1182, %v702, 0.0
        %v1185 = vadd.f32 %v1159, %v1183
        %v1186 = vadd.f32 %v1160, %v1184
        %v1187 = vsel %vm1171, -inf, %v985
        %v1188 = vsel %vm1172, -inf, %v986
        %1189 = vrot.lane.b32.xlu0 %v1143, 2
        %v1190 = vpop.permute.xlu0 %1189
        %1191 = vrot.lane.b32.xlu0 %v1144, 2
        %v1192 = vpop.permute.xlu0 %1191
        %vm1195 = vcmp.eq.f32.partialorder %v1009, %v1190
        %vm1196 = vcmp.eq.f32.partialorder %v1010, %v1192
        %v1197 = vsel %vm1195, 1, 0
        %v1198 = vsel %vm1196, 1, 0
        %1199 = vset.pattern.permute.xlu0 2
        %1200 = vperm.xlu0 %1199, %v1197
        %v1201 = vpop.permute.xlu0 %1200
        %1202 = vset.pattern.permute.xlu0 2
        %1203 = vperm.xlu0 %1202, %v1198
        %v1204 = vpop.permute.xlu0 %1203
        %vm1205 = vcmp.eq.s32.totalorder %v1201, 1
        %vm1206 = vcmp.eq.s32.totalorder %v1204, 1
        %v1207 = vsel %vm1205, %v703, 0.0
        %v1208 = vsel %vm1206, %v704, 0.0
        %v1209 = vadd.f32 %v1185, %v1207
        %v1210 = vadd.f32 %v1186, %v1208
        %v1211 = vsel %vm1195, -inf, %v1009
        %v1212 = vsel %vm1196, -inf, %v1010
        %1213 = vrot.lane.b32.xlu0 %v1143, 3
        %v1214 = vpop.permute.xlu0 %1213
        %1215 = vrot.lane.b32.xlu0 %v1144, 3
        %v1216 = vpop.permute.xlu0 %1215
        %vm1219 = vcmp.eq.f32.partialorder %v1033, %v1214
        %vm1220 = vcmp.eq.f32.partialorder %v1034, %v1216
        %v1221 = vsel %vm1219, 1, 0
        %v1222 = vsel %vm1220, 1, 0
        %1223 = vset.pattern.permute.xlu0 3
        %1224 = vperm.xlu0 %1223, %v1221
        %v1225 = vpop.permute.xlu0 %1224
        %1226 = vset.pattern.permute.xlu0 3
        %1227 = vperm.xlu0 %1226, %v1222
        %v1228 = vpop.permute.xlu0 %1227
        %vm1229 = vcmp.eq.s32.totalorder %v1225, 1
        %vm1230 = vcmp.eq.s32.totalorder %v1228, 1
        %v1231 = vsel %vm1229, %v705, 0.0
        %v1232 = vsel %vm1230, %v706, 0.0
        %v1233 = vadd.f32 %v1209, %v1231
        %v1234 = vadd.f32 %v1210, %v1232
        %v1235 = vsel %vm1219, -inf, %v1033
        %v1236 = vsel %vm1220, -inf, %v1034
        %vm1237 = vcmp.eq.f32.partialorder %v1051, %v1143
        %vm1238 = vcmp.eq.f32.partialorder %v1052, %v1144
        %v1239 = vsel %vm1237, 1, 0
        %v1240 = vsel %vm1238, 1, 0
        %1241 = vset.pattern.permute.xlu0 0
        %1242 = vperm.xlu0 %1241, %v1239
        %v1243 = vpop.permute.xlu0 %1242
        %1244 = vset.pattern.permute.xlu0 0
        %1245 = vperm.xlu0 %1244, %v1240
        %v1246 = vpop.permute.xlu0 %1245
        %vm1247 = vcmp.eq.s32.totalorder %v1243, 1
        %vm1248 = vcmp.eq.s32.totalorder %v1246, 1
        %v1249 = vsel %vm1247, %v587, 0.0
        %v1250 = vsel %vm1248, %v590, 0.0
        %v1251 = vadd.f32 %v1233, %v1249
        %v1252 = vadd.f32 %v1234, %v1250
        %v1253 = vsel %vm1237, -inf, %v1051
        %v1254 = vsel %vm1238, -inf, %v1052
        %vm1255 = vcmp.eq.f32.partialorder %v1069, %v1143
        %vm1256 = vcmp.eq.f32.partialorder %v1070, %v1144
        %v1257 = vsel %vm1255, 1, 0
        %v1258 = vsel %vm1256, 1, 0
        %1259 = vset.pattern.permute.xlu0 0
        %1260 = vperm.xlu0 %1259, %v1257
        %v1261 = vpop.permute.xlu0 %1260
        %1262 = vset.pattern.permute.xlu0 0
        %1263 = vperm.xlu0 %1262, %v1258
        %v1264 = vpop.permute.xlu0 %1263
        %vm1265 = vcmp.eq.s32.totalorder %v1261, 1
        %vm1266 = vcmp.eq.s32.totalorder %v1264, 1
        %v1267 = vsel %vm1265, %v622, 0.0
        %v1268 = vsel %vm1266, %v625, 0.0
        %v1269 = vadd.f32 %v1251, %v1267
        %v1270 = vadd.f32 %v1252, %v1268
        %v1271 = vsel %vm1255, -inf, %v1069
        %v1272 = vsel %vm1256, -inf, %v1070
        %vm1273 = vcmp.eq.f32.partialorder %v1087, %v1143
        %vm1274 = vcmp.eq.f32.partialorder %v1088, %v1144
        %v1275 = vsel %vm1273, 1, 0
        %v1276 = vsel %vm1274, 1, 0
        %1277 = vset.pattern.permute.xlu0 0
        %1278 = vperm.xlu0 %1277, %v1275
        %v1279 = vpop.permute.xlu0 %1278
        %1280 = vset.pattern.permute.xlu0 0
        %1281 = vperm.xlu0 %1280, %v1276
        %v1282 = vpop.permute.xlu0 %1281
        %vm1283 = vcmp.eq.s32.totalorder %v1279, 1
        %vm1284 = vcmp.eq.s32.totalorder %v1282, 1
        %v1285 = vsel %vm1283, %v657, 0.0
        %v1286 = vsel %vm1284, %v660, 0.0
        %v1287 = vadd.f32 %v1269, %v1285
        %v1288 = vadd.f32 %v1270, %v1286
        %v1289 = vsel %vm1273, -inf, %v1087
        %v1290 = vsel %vm1274, -inf, %v1088
        %vm1291 = vcmp.eq.f32.partialorder %v1105, %v1143
        %vm1292 = vcmp.eq.f32.partialorder %v1106, %v1144
        %v1293 = vsel %vm1291, 1, 0
        %v1294 = vsel %vm1292, 1, 0
        %1295 = vset.pattern.permute.xlu0 0
        %1296 = vperm.xlu0 %1295, %v1293
        %v1297 = vpop.permute.xlu0 %1296
        %1298 = vset.pattern.permute.xlu0 0
        %1299 = vperm.xlu0 %1298, %v1294
        %v1300 = vpop.permute.xlu0 %1299
        %vm1301 = vcmp.eq.s32.totalorder %v1297, 1
        %vm1302 = vcmp.eq.s32.totalorder %v1300, 1
        %v1303 = vsel %vm1301, %v692, 0.0
        %v1304 = vsel %vm1302, %v695, 0.0
        %v1305 = vadd.f32 %v1287, %v1303
        %v1306 = vadd.f32 %v1288, %v1304
        %v1307 = vsel %vm1291, -inf, %v1105
        %v1308 = vsel %vm1292, -inf, %v1106
        %1311 = vrot.lane.b32.xlu0 %v1187, 127
        %v1312 = vpop.permute.xlu0 %1311
        %1313 = vrot.lane.b32.xlu0 %v1188, 127
        %v1314 = vpop.permute.xlu0 %1313
        %v1317 = vmax.f32 %v1161, %v1312
        %v1318 = vmax.f32 %v1162, %v1314
        %1321 = vrot.lane.b32.xlu0 %v1211, 126
        %v1322 = vpop.permute.xlu0 %1321
        %1323 = vrot.lane.b32.xlu0 %v1212, 126
        %v1324 = vpop.permute.xlu0 %1323
        %v1327 = vmax.f32 %v1317, %v1322
        %v1328 = vmax.f32 %v1318, %v1324
        %1331 = vrot.lane.b32.xlu0 %v1235, 125
        %v1332 = vpop.permute.xlu0 %1331
        %1333 = vrot.lane.b32.xlu0 %v1236, 125
        %v1334 = vpop.permute.xlu0 %1333
        %v1337 = vmax.f32 %v1327, %v1332
        %v1338 = vmax.f32 %v1328, %v1334
        %v1339 = vmax.f32 %v1337, %v1253
        %v1340 = vmax.f32 %v1338, %v1254
        %v1341 = vmax.f32 %v1339, %v1271
        %v1342 = vmax.f32 %v1340, %v1272
        %v1343 = vmax.f32 %v1341, %v1289
        %v1344 = vmax.f32 %v1342, %v1290
        %v1345 = vmax.f32 %v1343, %v1307
        %v1346 = vmax.f32 %v1344, %v1308
        %vm1347 = vcmp.eq.f32.partialorder %v1161, %v1345
        %vm1348 = vcmp.eq.f32.partialorder %v1162, %v1346
        %v1349 = vsel %vm1347, 1, 0
        %v1350 = vsel %vm1348, 1, 0
        %1351 = vset.pattern.permute.xlu0 0
        %1352 = vperm.xlu0 %1351, %v1349
        %v1353 = vpop.permute.xlu0 %1352
        %1354 = vset.pattern.permute.xlu0 0
        %1355 = vperm.xlu0 %1354, %v1350
        %v1356 = vpop.permute.xlu0 %1355
        %vm1357 = vcmp.eq.s32.totalorder %v1353, 1
        %vm1358 = vcmp.eq.s32.totalorder %v1356, 1
        %v1359 = vsel %vm1357, %v699, 0.0
        %v1360 = vsel %vm1358, %v700, 0.0
        %v1361 = vadd.f32 %v1359, 0.0
        %v1362 = vadd.f32 %v1360, 0.0
        %1365 = vrot.lane.b32.xlu0 %v1345, 1
        %v1366 = vpop.permute.xlu0 %1365
        %1367 = vrot.lane.b32.xlu0 %v1346, 1
        %v1368 = vpop.permute.xlu0 %1367
        %vm1371 = vcmp.eq.f32.partialorder %v1187, %v1366
        %vm1372 = vcmp.eq.f32.partialorder %v1188, %v1368
        %v1373 = vsel %vm1371, 1, 0
        %v1374 = vsel %vm1372, 1, 0
        %1375 = vset.pattern.permute.xlu0 1
        %1376 = vperm.xlu0 %1375, %v1373
        %v1377 = vpop.permute.xlu0 %1376
        %1378 = vset.pattern.permute.xlu0 1
        %1379 = vperm.xlu0 %1378, %v1374
        %v1380 = vpop.permute.xlu0 %1379
        %vm1381 = vcmp.eq.s32.totalorder %v1377, 1
        %vm1382 = vcmp.eq.s32.totalorder %v1380, 1
        %v1383 = vsel %vm1381, %v701, 0.0
        %v1384 = vsel %vm1382, %v702, 0.0
        %v1385 = vadd.f32 %v1361, %v1383
        %v1386 = vadd.f32 %v1362, %v1384
        %1387 = vrot.lane.b32.xlu0 %v1345, 2
        %v1388 = vpop.permute.xlu0 %1387
        %1389 = vrot.lane.b32.xlu0 %v1346, 2
        %v1390 = vpop.permute.xlu0 %1389
        %vm1393 = vcmp.eq.f32.partialorder %v1211, %v1388
        %vm1394 = vcmp.eq.f32.partialorder %v1212, %v1390
        %v1395 = vsel %vm1393, 1, 0
        %v1396 = vsel %vm1394, 1, 0
        %1397 = vset.pattern.permute.xlu0 2
        %1398 = vperm.xlu0 %1397, %v1395
        %v1399 = vpop.permute.xlu0 %1398
        %1400 = vset.pattern.permute.xlu0 2
        %1401 = vperm.xlu0 %1400, %v1396
        %v1402 = vpop.permute.xlu0 %1401
        %vm1403 = vcmp.eq.s32.totalorder %v1399, 1
        %vm1404 = vcmp.eq.s32.totalorder %v1402, 1
        %v1405 = vsel %vm1403, %v703, 0.0
        %v1406 = vsel %vm1404, %v704, 0.0
        %v1407 = vadd.f32 %v1385, %v1405
        %v1408 = vadd.f32 %v1386, %v1406
        %1409 = vrot.lane.b32.xlu0 %v1345, 3
        %v1410 = vpop.permute.xlu0 %1409
        %1411 = vrot.lane.b32.xlu0 %v1346, 3
        %v1412 = vpop.permute.xlu0 %1411
        %vm1415 = vcmp.eq.f32.partialorder %v1235, %v1410
        %vm1416 = vcmp.eq.f32.partialorder %v1236, %v1412
        %v1417 = vsel %vm1415, 1, 0
        %v1418 = vsel %vm1416, 1, 0
        %1419 = vset.pattern.permute.xlu0 3
        %1420 = vperm.xlu0 %1419, %v1417
        %v1421 = vpop.permute.xlu0 %1420
        %1422 = vset.pattern.permute.xlu0 3
        %1423 = vperm.xlu0 %1422, %v1418
        %v1424 = vpop.permute.xlu0 %1423
        %vm1425 = vcmp.eq.s32.totalorder %v1421, 1
        %vm1426 = vcmp.eq.s32.totalorder %v1424, 1
        %v1427 = vsel %vm1425, %v705, 0.0
        %v1428 = vsel %vm1426, %v706, 0.0
        %v1429 = vadd.f32 %v1407, %v1427
        %v1430 = vadd.f32 %v1408, %v1428
        %vm1431 = vcmp.eq.f32.partialorder %v1253, %v1345
        %vm1432 = vcmp.eq.f32.partialorder %v1254, %v1346
        %v1433 = vsel %vm1431, 1, 0
        %v1434 = vsel %vm1432, 1, 0
        %1435 = vset.pattern.permute.xlu0 0
        %1436 = vperm.xlu0 %1435, %v1433
        %v1437 = vpop.permute.xlu0 %1436
        %1438 = vset.pattern.permute.xlu0 0
        %1439 = vperm.xlu0 %1438, %v1434
        %v1440 = vpop.permute.xlu0 %1439
        %vm1441 = vcmp.eq.s32.totalorder %v1437, 1
        %vm1442 = vcmp.eq.s32.totalorder %v1440, 1
        %v1443 = vsel %vm1441, %v587, 0.0
        %v1444 = vsel %vm1442, %v590, 0.0
        %v1445 = vadd.f32 %v1429, %v1443
        %v1446 = vadd.f32 %v1430, %v1444
        %vm1447 = vcmp.eq.f32.partialorder %v1271, %v1345
        %vm1448 = vcmp.eq.f32.partialorder %v1272, %v1346
        %v1449 = vsel %vm1447, 1, 0
        %v1450 = vsel %vm1448, 1, 0
        %1451 = vset.pattern.permute.xlu0 0
        %1452 = vperm.xlu0 %1451, %v1449
        %v1453 = vpop.permute.xlu0 %1452
        %1454 = vset.pattern.permute.xlu0 0
        %1455 = vperm.xlu0 %1454, %v1450
        %v1456 = vpop.permute.xlu0 %1455
        %vm1457 = vcmp.eq.s32.totalorder %v1453, 1
        %vm1458 = vcmp.eq.s32.totalorder %v1456, 1
        %v1459 = vsel %vm1457, %v622, 0.0
        %v1460 = vsel %vm1458, %v625, 0.0
        %v1461 = vadd.f32 %v1445, %v1459
        %v1462 = vadd.f32 %v1446, %v1460
        %vm1463 = vcmp.eq.f32.partialorder %v1289, %v1345
        %vm1464 = vcmp.eq.f32.partialorder %v1290, %v1346
        %v1465 = vsel %vm1463, 1, 0
        %v1466 = vsel %vm1464, 1, 0
        %1467 = vset.pattern.permute.xlu0 0
        %1468 = vperm.xlu0 %1467, %v1465
        %v1469 = vpop.permute.xlu0 %1468
        %1470 = vset.pattern.permute.xlu0 0
        %1471 = vperm.xlu0 %1470, %v1466
        %v1472 = vpop.permute.xlu0 %1471
        %vm1473 = vcmp.eq.s32.totalorder %v1469, 1
        %vm1474 = vcmp.eq.s32.totalorder %v1472, 1
        %v1475 = vsel %vm1473, %v657, 0.0
        %v1476 = vsel %vm1474, %v660, 0.0
        %v1477 = vadd.f32 %v1461, %v1475
        %v1478 = vadd.f32 %v1462, %v1476
        %vm1479 = vcmp.eq.f32.partialorder %v1307, %v1345
        %vm1480 = vcmp.eq.f32.partialorder %v1308, %v1346
        %v1481 = vsel %vm1479, 1, 0
        %v1482 = vsel %vm1480, 1, 0
        %1483 = vset.pattern.permute.xlu0 0
        %1484 = vperm.xlu0 %1483, %v1481
        %v1485 = vpop.permute.xlu0 %1484
        %1486 = vset.pattern.permute.xlu0 0
        %1487 = vperm.xlu0 %1486, %v1482
        %v1488 = vpop.permute.xlu0 %1487
        %vm1489 = vcmp.eq.s32.totalorder %v1485, 1
        %vm1490 = vcmp.eq.s32.totalorder %v1488, 1
        %v1491 = vsel %vm1489, %v692, 0.0
        %v1492 = vsel %vm1490, %v695, 0.0
        %v1493 = vadd.f32 %v1477, %v1491
        %v1494 = vadd.f32 %v1478, %v1492
        %vm1495 = vcmask 7168
        %v1496 = vsel %vm1495, %v739, %v964
        %v1497 = vsel %vm1495, %v740, %v966
        %vm1498 = vcmask 15360
        %v1499 = vsel %vm1498, %v1496, %v1190
        %v1500 = vsel %vm1498, %v1497, %v1192
        %vm1501 = vcmask 23552
        %v1502 = vsel %vm1501, %v1499, %v1410
        %v1503 = vsel %vm1501, %v1500, %v1412
        %vm1504 = vcmask 31744
        %1505 = vst.msk [vmem:[#allocation3] sm:$0xff] %vm1504, %v1502
        %1506 = vst.msk [vmem:[#allocation3 + $0x8] sm:$0xff] %vm1504, %v1503
        %1507 = vst.msk [vmem:[#allocation4] sm:$0xff] %vm471, %v901
        %1508 = vst.msk [vmem:[#allocation4 + $0x8] sm:$0xff] %vm471, %v902
        %1509 = vst.msk [vmem:[#allocation5] sm:$0xff] %vm471, %v1103
        %1510 = vst.msk [vmem:[#allocation5 + $0x8] sm:$0xff] %vm471, %v1104
        %1511 = vst.msk [vmem:[#allocation6] sm:$0xff] %vm471, %v1305
        %1512 = vst.msk [vmem:[#allocation6 + $0x8] sm:$0xff] %vm471, %v1306
        %1513 = vst.msk [vmem:[#allocation7] sm:$0xff] %vm471, %v1493
        %1514 = vst.msk [vmem:[#allocation7 + $0x8] sm:$0xff] %vm471, %v1494
        %p1515 = scmp.eq.s32.totalorder %s27, 1
        // Predicated region
        $region57: #{tpu_custom_call.1} parent=51 // pred_check
          %p1516 = pneg %p1515
        $region58: #{tpu_custom_call.1} parent=51 // pred_check_branch
          %1518 = sbr.rel (%p1516) target = $region60
        $region59: #{tpu_custom_call.1} parent=51 // pred_region
          %v1519 = vld [vmem:[#allocation3] sm:$0xff]
          %v1520 = vld [vmem:[#allocation3 + $0x8] sm:$0xff]
          %v1521 = vmul.f32 %v1519, 1.442695
          %v1522 = vpow.pop %v1521
          %v1523 = vmul.f32 %v1520, 1.442695
          %v1524 = vpow.pop %v1523
          %v1525 = vsel %vm1504, %v1522, -inf
          %1526 = vmax.xlane.f32.xlu0 %v1525
          %v1527 = vpop.xlane.xlu0 %1526
          %v1528 = vsel %vm1504, %v1524, -inf
          %1529 = vmax.xlane.f32.xlu0 %v1528
          %v1530 = vpop.xlane.xlu0 %1529
          %v1531 = vsub.f32 %v1522, %v1527
          %v1532 = vsub.f32 %v1524, %v1530
          %v1533 = vmul.f32 %v1531, 1.442695
          %v1534 = vpow.pop %v1533
          %v1535 = vmul.f32 %v1532, 1.442695
          %v1536 = vpow.pop %v1535
          %v1537 = vsel %vm1504, %v1534, 0.0
          %1538 = vadd.xlane.f32.xlu0 %v1537
          %v1539 = vpop.xlane.xlu0 %1538
          %v1540 = vsel %vm1504, %v1536, 0.0
          %1541 = vadd.xlane.f32.xlu0 %v1540
          %v1542 = vpop.xlane.xlu0 %1541
          %v1543 = vrcp.pop %v1539
          %v1544 = vmul.f32 %v1539, %v1543
          %v1545 = vsub.f32 1.0, %v1544
          %v1546 = vmul.f32 %v1543, %v1545
          %v1547 = vadd.f32 %v1543, %v1546
          %vm1548 = vweird.f32 %v1539
          %vm1549 = vweird.f32 %v1543
          %vm1550 = vmor %vm1548, %vm1549
          %v1551 = vsel %vm1550, %v1543, %v1547
          %v1552 = vand.u32 2147483647, %v1539
          %vm1553 = vcmp.eq.f32.partialorder %v1552, 8.507059e+37
          %v1554 = vand.u32 %v1539, 2147483648
          %v1555 = vor.u32 1.1754944e-38, %v1554
          %v1556 = vsel %vm1553, %v1555, %v1551
          %v1557 = vmul.f32 %v1534, %v1556
          %v1558 = vrcp.pop %v1542
          %v1559 = vmul.f32 %v1542, %v1558
          %v1560 = vsub.f32 1.0, %v1559
          %v1561 = vmul.f32 %v1558, %v1560
          %v1562 = vadd.f32 %v1558, %v1561
          %vm1563 = vweird.f32 %v1542
          %vm1564 = vweird.f32 %v1558
          %vm1565 = vmor %vm1563, %vm1564
          %v1566 = vsel %vm1565, %v1558, %v1562
          %v1567 = vand.u32 2147483647, %v1542
          %vm1568 = vcmp.eq.f32.partialorder %v1567, 8.507059e+37
          %v1569 = vand.u32 %v1542, 2147483648
          %v1570 = vor.u32 1.1754944e-38, %v1569
          %v1571 = vsel %vm1568, %v1570, %v1566
          %v1572 = vmul.f32 %v1536, %v1571
          %v1573 = vld [vmem:[#allocation4] sm:$0xff]
          %v1574 = vld [vmem:[#allocation4 + $0x8] sm:$0xff]
          %1576 = vset.pattern.permute.xlu0 0
          %1577 = vperm.xlu0 %1576, %v1557
          %v1578 = vpop.permute.xlu0 %1577
          %1581 = vset.pattern.permute.xlu0 0
          %1582 = vperm.xlu0 %1581, %v1572
          %v1583 = vpop.permute.xlu0 %1582
          %v1585 = vmul.f32 %v1578, %v1573
          %v1586 = vmul.f32 %v1583, %v1574
          %v1587 = vadd.f32 %v1585, 0.0
          %v1588 = vadd.f32 %v1586, 0.0
          %v1589 = vld [vmem:[#allocation5] sm:$0xff]
          %v1590 = vld [vmem:[#allocation5 + $0x8] sm:$0xff]
          %1591 = vset.pattern.permute.xlu0 1
          %1592 = vperm.xlu0 %1591, %v1557
          %v1593 = vpop.permute.xlu0 %1592
          %1595 = vset.pattern.permute.xlu0 1
          %1596 = vperm.xlu0 %1595, %v1572
          %v1597 = vpop.permute.xlu0 %1596
          %v1599 = vmul.f32 %v1593, %v1589
          %v1600 = vmul.f32 %v1597, %v1590
          %v1601 = vadd.f32 %v1587, %v1599
          %v1602 = vadd.f32 %v1588, %v1600
          %v1603 = vld [vmem:[#allocation6] sm:$0xff]
          %v1604 = vld [vmem:[#allocation6 + $0x8] sm:$0xff]
          %1605 = vset.pattern.permute.xlu0 2
          %1606 = vperm.xlu0 %1605, %v1557
          %v1607 = vpop.permute.xlu0 %1606
          %1609 = vset.pattern.permute.xlu0 2
          %1610 = vperm.xlu0 %1609, %v1572
          %v1611 = vpop.permute.xlu0 %1610
          %v1613 = vmul.f32 %v1607, %v1603
          %v1614 = vmul.f32 %v1611, %v1604
          %v1615 = vadd.f32 %v1601, %v1613
          %v1616 = vadd.f32 %v1602, %v1614
          %v1617 = vld [vmem:[#allocation7] sm:$0xff]
          %v1618 = vld [vmem:[#allocation7 + $0x8] sm:$0xff]
          %1619 = vset.pattern.permute.xlu0 3
          %1620 = vperm.xlu0 %1619, %v1557
          %v1621 = vpop.permute.xlu0 %1620
          %1623 = vset.pattern.permute.xlu0 3
          %1624 = vperm.xlu0 %1623, %v1572
          %v1625 = vpop.permute.xlu0 %1624
          %v1627 = vmul.f32 %v1621, %v1617
          %v1628 = vmul.f32 %v1625, %v1618
          %v1629 = vadd.f32 %v1615, %v1627
          %v1630 = vadd.f32 %v1616, %v1628
          %1632 = vrot.lane.b32.xlu0 %v1630, 16
          %v1633 = vpop.permute.xlu0 %1632
          %v1635 = vsel %vm471, %v1629, %v1633
          %v1636 = vld [vmem:[%s6] sm:$0xff]
          %v1637 = vld [vmem:[%s6 + $0x8] sm:$0xff]
          %v1638 = vld [vmem:[%s6 + $0x10] sm:$0xff]
          %v1639 = vld [vmem:[%s6 + $0x18] sm:$0xff]
          %v1640 = vld [vmem:[%s7] sm:$0x1]
          %v1642 = vperm.slane %v1640, 0
          %vm1644 = vcmask 261120
          %v1646 = vsel %vm1644, %v1635, 0
          %1648 = vmatpush.msra.mxu0 0.0
          %1649 = vmatpush.msra.mxu0 0.0
          %1650 = vmatpush.msra.mxu0 0.0
          %1651 = vmatpush.msra.mxu0 0.0
          %1652 = vmatpush.msra.mxu0 0.0
          %1653 = vmatpush.msra.mxu0 0.0
          %1654 = vmatpush.msra.mxu0 0.0
          %1655 = vmatpush.msra.mxu0 0.0
          %1656 = vmatpush.msra.mxu0 0.0
          %1657 = vmatpush.msra.mxu0 0.0
          %1658 = vmatpush.msra.mxu0 0.0
          %1659 = vmatpush.msra.mxu0 0.0
          %1660 = vmatpush.msra.mxu0 %v1639
          %1661 = vmatpush.msra.mxu0 %v1638
          %1662 = vmatpush.msra.mxu0 %v1637
          %1663 = vmatpush.msra.mxu0 %v1636
          %1664 = vmatmul.f32.gmra.mxu0 %v1646
          %v1665 = vpop.f32.mrf.mxu0
          %v1666 = vadd.f32 %v1642, %v1665
          %1667 = vdwg.mxu0
          %1668 = vst [vmem:[%s324] sm:$0xff] %v1666
        $region60: #{tpu_custom_call.1} parent=51 // pred_fallthru
          _
        %s1669 = sand.u32 %s220, 1
        %s1670 = scalar_lea.sflag [#allocation9], %s1669
        %s1671 = sand.u32 %s220, 1
        %s1672 = smul.addr %s1671, 8
        %s1673 = scalar_lea.vmem [#allocation8], %s1672
        // Predicated region
        $region61: #{tpu_custom_call.1} parent=51 // pred_check
          %p1674 = pneg %p230
        $region62: #{tpu_custom_call.1} parent=51 // pred_check_branch
          %1676 = sbr.rel (%p1674) target = $region64
        $region63: #{tpu_custom_call.1} parent=51 // pred_region
          %1678 = vsyncadd %s1670, 0
          %s1679 = smul.addr %s26, 8
          %s1680 = scalar_lea.hbm %s8, %s1679
          %s1682 = sshll.u32 %s1673, 4
          %s1683 = int_to_ptr.vmem [resolvable:$true] %s1682
          %s1684 = sshll.u32 %s1680, 4
          %s1685 = int_to_ptr.hbm [resolvable:$true] %s1684
          %1687 = dma.vmem_to_hbm [thread:$0]  %s1683, 128, %s1685, %s1670
        $region64: #{tpu_custom_call.1} parent=51 // pred_fallthru
          _
      $region52: #{tpu_custom_call.1} parent=5 // pred_fallthru
        _
      %p1688 = scmp.le.s32.totalorder 2, %s17
      // Predicated region
      $region65: #{tpu_custom_call.1} parent=5 // pred_check
        %p1689 = pneg %p1688
      $region66: #{tpu_custom_call.1} parent=5 // pred_check_branch
        %1691 = sbr.rel (%p1689) target = $region68
      $region67: #{tpu_custom_call.1} parent=5 // pred_region
        %s1692 = ssub.s32 %s17, 2
        // Predicated region
        $region69: #{tpu_custom_call.1} parent=67 // pred_check
          %p1693 = pneg %p236
        $region70: #{tpu_custom_call.1} parent=67 // pred_check_branch
          %1695 = sbr.rel (%p1693) target = $region72
        $region71: #{tpu_custom_call.1} parent=67 // pred_region
          %s1696 = sand.u32 %s221, 1
          %s1697 = scalar_lea.sflag [#allocation9], %s1696
          %s1698 = sand.u32 %s221, 1
          %s1699 = smul.addr %s1698, 8
          %s1700 = scalar_lea.vmem [#allocation8], %s1699
          %1702 = dma.done %s1697, 128
        $region72: #{tpu_custom_call.1} parent=67 // pred_fallthru
          _
      $region68: #{tpu_custom_call.1} parent=5 // pred_fallthru
        _
    $region6: #{tpu_custom_call.1} parent=1 // loop_footer
      %s21 = sadd.s32 1, %s17
    $region7: #{tpu_custom_call.1} parent=1 // loop_footer_branch
      %16 = sbr.rel target = $region3
    $region8: #{tpu_custom_call.1} parent=1 // loop_exit
      _
    %1703 = vsyncpa [#allocation9], 1
    %s1704 = scalar_lea.sflag [#allocation9], 1
    %1705 = vsyncpa %s1704, 1

</llo_original>
